<compile_context>
chip_gen: v5e
topology: v5e:2x2
jax: 0.10.0
libtpu: 0.0.40
codegen_flags: <defaults>
</compile_context>

<pallas_src>
import functools

import jax
import jax.numpy as jnp
from jax.experimental import pallas as pl
from jax.experimental.pallas import tpu as pltpu

COMPUTE_DTYPE = jnp.bfloat16          # MXU operand dtype (accumulation is always f32)
VMEM_LIMIT_BYTES = 48 * 1024 * 1024   # under v7x's 64 MiB/TC, well under v5e/v6e's 128 MiB


# ----------------------------------------------------------------------------
# Kernel 1: fused wide QKV projection (lane-dense (tile, C) outputs)
# ----------------------------------------------------------------------------
def qkv_proj_kernel(src_ref, pos_ref, wqk_ref, bqk_ref, wv_ref, bv_ref,
                    q_ref, k_ref, v_ref):
    cdt = wqk_ref.dtype
    x = src_ref[0]                                      # (tn, C) f32
    qk_in = (x + pos_ref[0]).astype(cdt)                # q = k input = src + pos
    qk = jnp.dot(qk_in, wqk_ref[...],
                 preferred_element_type=jnp.float32) + bqk_ref[...]       # (tn, 2C) f32
    vp = jnp.dot(x.astype(cdt), wv_ref[...],
                 preferred_element_type=jnp.float32) + bv_ref[...]        # (tn, C)  f32
    c = x.shape[-1]
    q_ref[0] = qk[:, :c].astype(q_ref.dtype)            # Q already pre-scaled by 1/sqrt(dh)
    k_ref[0] = qk[:, c:].astype(k_ref.dtype)
    v_ref[0] = vp.astype(v_ref.dtype)


# ----------------------------------------------------------------------------
# Kernel 2: flash attention over kv tiles + (last kv step) out-proj, LN1, FFN, LN2
# ----------------------------------------------------------------------------
def attn_ffn_kernel(q_ref, k_ref, v_ref, src_ref,
                    wo_ref, bo_ref, g1_ref, be1_ref,
                    w1_ref, b1_ref, w2_ref, b2_ref,
                    g2_ref, be2_ref,
                    out_ref, m_scr, l_scr, acc_scr, *, nhead):
    eps = 1e-5
    cdt = wo_ref.dtype
    kv = pl.program_id(2)
    tq, c = q_ref.shape[1], q_ref.shape[2]
    dh = c // nhead

    @pl.when(kv == 0)
    def _init():
        m_scr[...] = jnp.full_like(m_scr, -jnp.inf)
        l_scr[...] = jnp.zeros_like(l_scr)
        acc_scr[...] = jnp.zeros_like(acc_scr)

    # Head split via static lane slices (cheap copies; matmul operands end up bf16).
    q2 = q_ref[0].astype(cdt)                           # (tq, C)
    k2 = k_ref[0].astype(cdt)                           # (tk, C)
    v2 = v_ref[0].astype(cdt)                           # (tk, C)
    qh = jnp.stack([q2[:, h * dh:(h + 1) * dh] for h in range(nhead)], axis=0)  # (H, tq, dh)
    kh = jnp.stack([k2[:, h * dh:(h + 1) * dh] for h in range(nhead)], axis=0)  # (H, tk, dh)
    vh = jnp.stack([v2[:, h * dh:(h + 1) * dh] for h in range(nhead)], axis=0)  # (H, tk, dh)

    # Online-softmax update for this kv tile.
    s = jnp.einsum('hqd,hkd->hqk', qh, kh,
                   preferred_element_type=jnp.float32)                    # (H, tq, tk) f32
    m_prev = m_scr[...]
    m_new = jnp.maximum(m_prev, jnp.max(s, axis=-1, keepdims=True))
    alpha = jnp.exp(m_prev - m_new)
    p = jnp.exp(s - m_new)
    l_scr[...] = alpha * l_scr[...] + jnp.sum(p, axis=-1, keepdims=True)
    acc_scr[...] = alpha * acc_scr[...] + jnp.einsum(
        'hqk,hkd->hqd', p.astype(cdt), vh, preferred_element_type=jnp.float32)
    m_scr[...] = m_new

    @pl.when(kv == pl.num_programs(2) - 1)
    def _finalize():
        o = acc_scr[...] * pl.reciprocal(l_scr[...], approx=True)         # (H, tq, dh) f32
        o = jnp.concatenate([o[h] for h in range(nhead)], axis=-1)        # merge heads -> (tq, C)

        # output projection: one full-depth matmul
        attn = jnp.dot(o.astype(cdt), wo_ref[...],
                       preferred_element_type=jnp.float32) + bo_ref[...]  # (tq, C)

        # residual + LayerNorm1 (dropout1 = identity); two-pass variance
        h = src_ref[0] + attn
        mu = jnp.mean(h, axis=-1, keepdims=True)
        d = h - mu
        var = jnp.mean(d * d, axis=-1, keepdims=True)
        h = d * jax.lax.rsqrt(var + eps) * g1_ref[...] + be1_ref[...]

        # FFN: linear1 -> relu -> (dropout = identity) -> linear2
        f = jnp.dot(h.astype(cdt), w1_ref[...],
                    preferred_element_type=jnp.float32) + b1_ref[...]
        f = jnp.maximum(f, 0.0)
        f = jnp.dot(f.astype(cdt), w2_ref[...],
                    preferred_element_type=jnp.float32) + b2_ref[...]

        # residual + LayerNorm2 (dropout2 = identity)
        h2 = h + f
        mu2 = jnp.mean(h2, axis=-1, keepdims=True)
        d2 = h2 - mu2
        var2 = jnp.mean(d2 * d2, axis=-1, keepdims=True)
        out_ref[0] = (d2 * jax.lax.rsqrt(var2 + eps) * g2_ref[...] + be2_ref[...]
                      ).astype(out_ref.dtype)


# ----------------------------------------------------------------------------
# pallas_call plumbing
# ----------------------------------------------------------------------------
def _const_spec(shape, single_buffer):
    zeros = (0,) * len(shape)
    if single_buffer:
        # constant-index weight/bias blocks: no need to double-buffer them
        return pl.BlockSpec(shape, lambda *_: zeros, pipeline_mode=pl.Buffered(1))
    return pl.BlockSpec(shape, lambda *_: zeros)


def _forward(src_b, pos_b, w, *, nhead, tq, tk, tn, single_buffer):
    bsz, n_seq, c = src_b.shape
    dff = w['w_1'].shape[1]
    dh = c // nhead
    cspec = functools.partial(_const_spec, single_buffer=single_buffer)

    # ---- kernel 1: wide QKV projection --------------------------------------
    seq_spec = pl.BlockSpec((1, tn, c), lambda b, t: (b, t, 0))
    q_a, k_a, v_a = pl.pallas_call(
        qkv_proj_kernel,
        out_shape=(jax.ShapeDtypeStruct((bsz, n_seq, c), jnp.float32),
                   jax.ShapeDtypeStruct((bsz, n_seq, c), jnp.float32),
                   jax.ShapeDtypeStruct((bsz, n_seq, c), jnp.float32)),
        grid=(bsz, n_seq // tn),
        in_specs=[seq_spec, seq_spec,
                  cspec((c, 2 * c)), cspec((1, 2 * c)),
                  cspec((c, c)), cspec((1, c))],
        out_specs=(seq_spec, seq_spec, seq_spec),
        compiler_params=pltpu.CompilerParams(
            dimension_semantics=("parallel", "parallel"),
            vmem_limit_bytes=VMEM_LIMIT_BYTES),
    )(src_b, pos_b, w['w_qk'], w['b_qk'], w['w_v'], w['b_v'])

    # ---- kernel 2: flash attention + out-proj + LN1 + FFN + LN2 -------------
    q_spec = pl.BlockSpec((1, tq, c), lambda b, qi, kv: (b, qi, 0))
    kv_spec = pl.BlockSpec((1, tk, c), lambda b, qi, kv: (b, kv, 0))
    out_spec = pl.BlockSpec((1, tq, c), lambda b, qi, kv: (b, qi, 0))

    out_b = pl.pallas_call(
        functools.partial(attn_ffn_kernel, nhead=nhead),
        out_shape=jax.ShapeDtypeStruct((bsz, n_seq, c), jnp.float32),
        grid=(bsz, n_seq // tq, n_seq // tk),
        in_specs=[q_spec, kv_spec, kv_spec, q_spec,
                  cspec((c, c)), cspec((1, c)),
                  cspec((1, c)), cspec((1, c)),
                  cspec((c, dff)), cspec((1, dff)),
                  cspec((dff, c)), cspec((1, c)),
                  cspec((1, c)), cspec((1, c))],
        out_specs=out_spec,
        scratch_shapes=[pltpu.VMEM((nhead, tq, 1), jnp.float32),   # m
                        pltpu.VMEM((nhead, tq, 1), jnp.float32),   # l
                        pltpu.VMEM((nhead, tq, dh), jnp.float32)], # acc
        compiler_params=pltpu.CompilerParams(
            dimension_semantics=("parallel", "parallel", "arbitrary"),
            vmem_limit_bytes=VMEM_LIMIT_BYTES),
    )(q_a, k_a, v_a, src_b,
      w['w_o'], w['b_o'], w['ln1_g'], w['ln1_b'],
      w['w_1'], w['b_1'], w['w_2'], w['b_2'],
      w['ln2_g'], w['ln2_b'])
    return out_b


# ----------------------------------------------------------------------------
# Wrapper (mirrors the PyTorch module's forward; normalize_before=False, eval mode)
# ----------------------------------------------------------------------------
def transformer_encoder_layer(src, pos, params, *, nhead,
                              q_tile=None, kv_tile=None, proj_tile=None):
    """src, pos: (N, B, C) float32, seq-first (nn.MultiheadAttention layout). Returns (N, B, C)."""
    n_seq, bsz, c = src.shape
    dff = params['w1'].shape[0]
    dh = c // nhead
    assert c % nhead == 0

    def pick(t):
        t = t if t is not None else min(128, n_seq)
        assert n_seq % t == 0 and (t % 8 == 0 or t == n_seq)
        return t
    tq, tk, tn = pick(q_tile), pick(kv_tile), pick(proj_tile)

    # (N, B, C) -> (B, N, C): batch is the leading "parallel" grid axis.
    src_b = jnp.transpose(src, (1, 0, 2)).astype(jnp.float32)
    if pos is None:
        pos_b = jnp.zeros_like(src_b)   # TODO(synk): skip the add instead of streaming zeros
    else:
        pos_b = jnp.transpose(pos, (1, 0, 2)).astype(jnp.float32)

    # One-time weight re-layouts (PyTorch Linear stores (out, in)); MXU operands in bf16.
    scale = 1.0 / (dh ** 0.5)           # folded into Wq / bq (PyTorch scales q before QK^T)
    wq_t = jnp.transpose(params['wq']).astype(jnp.float32) * scale
    wk_t = jnp.transpose(params['wk']).astype(jnp.float32)
    prepped = {
        'w_qk': jnp.concatenate([wq_t, wk_t], axis=1).astype(COMPUTE_DTYPE),      # (C, 2C)
        'b_qk': jnp.concatenate([params['bq'][0] * scale, params['bk'][0]]
                                ).reshape(1, 2 * c).astype(jnp.float32),
        'w_v': jnp.transpose(params['wv']).astype(COMPUTE_DTYPE),                 # (C, C)
        'b_v': params['bv'].reshape(1, c).astype(jnp.float32),
        'w_o': jnp.transpose(params['wo']).astype(COMPUTE_DTYPE),                 # (C, C)
        'b_o': params['bo'].reshape(1, c).astype(jnp.float32),
        'ln1_g': params['ln1_g'].reshape(1, c).astype(jnp.float32),
        'ln1_b': params['ln1_b'].reshape(1, c).astype(jnp.float32),
        'w_1': jnp.transpose(params['w1']).astype(COMPUTE_DTYPE),                 # (C, dff)
        'b_1': params['b1'].reshape(1, dff).astype(jnp.float32),
        'w_2': jnp.transpose(params['w2']).astype(COMPUTE_DTYPE),                 # (dff, C)
        'b_2': params['b2'].reshape(1, c).astype(jnp.float32),
        'ln2_g': params['ln2_g'].reshape(1, c).astype(jnp.float32),
        'ln2_b': params['ln2_b'].reshape(1, c).astype(jnp.float32),
    }

    kwargs = dict(nhead=nhead, tq=tq, tk=tk, tn=tn)
    try:
        out_b = _forward(src_b, pos_b, prepped, single_buffer=True, **kwargs)
    except Exception:
        # pl.Buffered(1) single-buffering not supported by this jax/Mosaic build ->
        # fall back to default double-buffered BlockSpecs (correctness unchanged).
        out_b = _forward(src_b, pos_b, prepped, single_buffer=False, **kwargs)

    return jnp.transpose(out_b, (1, 0, 2))


# ----------------------------------------------------------------------------
# Pure-JAX f32 reference (correctness check)
# ----------------------------------------------------------------------------
def reference_forward(src, pos, params, *, nhead):
    n, b, c = src.shape
    dh = c // nhead
    q = src + pos
    k = src + pos
    v = src

    def proj(t, w, bias):
        return jnp.einsum('nbc,dc->nbd', t, w) + bias[0]

    qp = proj(q, params['wq'], params['bq'])
    kp = proj(k, params['wk'], params['bk'])
    vp = proj(v, params['wv'], params['bv'])
    qh = qp.reshape(n, b, nhead, dh)
    kh = kp.reshape(n, b, nhead, dh)
    vh = vp.reshape(n, b, nhead, dh)
    s = jnp.einsum('nbhd,mbhd->bhnm', qh, kh) / jnp.sqrt(dh)
    p = jax.nn.softmax(s, axis=-1)
    o = jnp.einsum('bhnm,mbhd->nbhd', p, vh).reshape(n, b, c)
    o = jnp.einsum('nbc,dc->nbd', o, params['wo']) + params['bo'][0]

    def ln(t, g, be):
        mu = jnp.mean(t, axis=-1, keepdims=True)
        var = jnp.mean((t - mu) ** 2, axis=-1, keepdims=True)
        return (t - mu) * jax.lax.rsqrt(var + 1e-5) * g[0] + be[0]

    h = ln(src + o, params['ln1_g'], params['ln1_b'])
    f = jax.nn.relu(jnp.einsum('nbc,fc->nbf', h, params['w1']) + params['b1'][0])
    f = jnp.einsum('nbf,cf->nbc', f, params['w2']) + params['b2'][0]
    return ln(h + f, params['ln2_g'], params['ln2_b'])


# ----------------------------------------------------------------------------
# Main
# ----------------------------------------------------------------------------
if __name__ == "__main__":
    N_SEQ, BATCH, D_MODEL, NHEAD, D_FF = 16, 2, 32, 4, 64

    key = jax.random.PRNGKey(0)
    ks = jax.random.split(key, 12)
    scale = 0.05

    params = {
        # MultiheadAttention in_proj split into q/k/v (PyTorch Linear layout: (out, in))
        'wq': scale * jax.random.normal(ks[0], (D_MODEL, D_MODEL), jnp.float32),
        'wk': scale * jax.random.normal(ks[1], (D_MODEL, D_MODEL), jnp.float32),
        'wv': scale * jax.random.normal(ks[2], (D_MODEL, D_MODEL), jnp.float32),
        'bq': scale * jax.random.normal(ks[3], (1, D_MODEL), jnp.float32),
        'bk': scale * jax.random.normal(ks[4], (1, D_MODEL), jnp.float32),
        'bv': scale * jax.random.normal(ks[5], (1, D_MODEL), jnp.float32),
        'wo': scale * jax.random.normal(ks[6], (D_MODEL, D_MODEL), jnp.float32),
        'bo': scale * jax.random.normal(ks[7], (1, D_MODEL), jnp.float32),
        # FFN
        'w1': scale * jax.random.normal(ks[8], (D_FF, D_MODEL), jnp.float32),
        'b1': scale * jax.random.normal(ks[9], (1, D_FF), jnp.float32),
        'w2': scale * jax.random.normal(ks[10], (D_MODEL, D_FF), jnp.float32),
        'b2': jnp.zeros((1, D_MODEL), jnp.float32),
        # LayerNorms
        'ln1_g': jnp.ones((1, D_MODEL), jnp.float32),
        'ln1_b': jnp.zeros((1, D_MODEL), jnp.float32),
        'ln2_g': jnp.ones((1, D_MODEL), jnp.float32),
        'ln2_b': jnp.zeros((1, D_MODEL), jnp.float32),
    }

    data_key = jax.random.split(ks[11], 2)
    src = jax.random.normal(data_key[0], (N_SEQ, BATCH, D_MODEL), jnp.float32)
    pos = jax.random.normal(data_key[1], (N_SEQ, BATCH, D_MODEL), jnp.float32)

    # small tiles so the toy shape actually exercises the (batch, q_tile, kv_tile) flash grid
    out = transformer_encoder_layer(src, pos, params, nhead=NHEAD,
                                    q_tile=8, kv_tile=8, proj_tile=8)
    out = jax.block_until_ready(out)

    ref = reference_forward(src, pos, params, nhead=NHEAD)
    assert out.shape == (N_SEQ, BATCH, D_MODEL)
    # tolerance accounts for bf16 MXU operands (f32 accumulation) + approx reciprocal in softmax
    assert jnp.allclose(out, ref, atol=2e-2, rtol=2e-2), "kernel output mismatch vs reference"

    print("KERNEL_OK")
</pallas_src>

<mosaic_0001>
module attributes {stable_mosaic.version = 11 : i64} {
  func.func @qkv_proj_kernel(%arg0: i32, %arg1: i32, %arg2: memref<1x8x32xf32, #tpu.memory_space<vmem>>, %arg3: memref<1x8x32xf32, #tpu.memory_space<vmem>>, %arg4: memref<32x64xbf16, #tpu.memory_space<vmem>>, %arg5: memref<1x64xf32, #tpu.memory_space<vmem>>, %arg6: memref<32x32xbf16, #tpu.memory_space<vmem>>, %arg7: memref<1x32xf32, #tpu.memory_space<vmem>>, %arg8: memref<1x8x32xf32, #tpu.memory_space<vmem>>, %arg9: memref<1x8x32xf32, #tpu.memory_space<vmem>>, %arg10: memref<1x8x32xf32, #tpu.memory_space<vmem>>) attributes {dimension_semantics = [#tpu.dimension_semantics<parallel>, #tpu.dimension_semantics<parallel>], iteration_bounds = array<i64: 2, 2>, scalar_prefetch = 0 : i64, scratch_operands = 0 : i64, tpu.core_type = #tpu.core_type<tc>, window_params = [{transform_indices = @transform_0, window_bounds = array<i64: 1, 8, 32>}, {transform_indices = @transform_1, window_bounds = array<i64: 1, 8, 32>}, {pipeline_mode = #tpu.pipeline_mode<synchronous>, transform_indices = @transform_2, window_bounds = array<i64: 32, 64>}, {pipeline_mode = #tpu.pipeline_mode<synchronous>, transform_indices = @transform_3, window_bounds = array<i64: 1, 64>}, {pipeline_mode = #tpu.pipeline_mode<synchronous>, transform_indices = @transform_4, window_bounds = array<i64: 32, 32>}, {pipeline_mode = #tpu.pipeline_mode<synchronous>, transform_indices = @transform_5, window_bounds = array<i64: 1, 32>}, {transform_indices = @transform_6, window_bounds = array<i64: 1, 8, 32>}, {transform_indices = @transform_7, window_bounds = array<i64: 1, 8, 32>}, {transform_indices = @transform_8, window_bounds = array<i64: 1, 8, 32>}]} {
    %c0 = arith.constant 0 : index
    %c0_0 = arith.constant 0 : index
    %c0_1 = arith.constant 0 : index
    %0 = vector.load %arg2[%c0, %c0_0, %c0_1] : memref<1x8x32xf32, #tpu.memory_space<vmem>>, vector<1x8x32xf32>
    %1 = vector.shape_cast %0 : vector<1x8x32xf32> to vector<8x32xf32>
    %c0_2 = arith.constant 0 : index
    %c0_3 = arith.constant 0 : index
    %c0_4 = arith.constant 0 : index
    %2 = vector.load %arg3[%c0_2, %c0_3, %c0_4] : memref<1x8x32xf32, #tpu.memory_space<vmem>>, vector<1x8x32xf32>
    %3 = vector.shape_cast %2 : vector<1x8x32xf32> to vector<8x32xf32>
    %4 = arith.addf %1, %3 : vector<8x32xf32>
    %5 = arith.truncf %4 : vector<8x32xf32> to vector<8x32xbf16>
    %c0_5 = arith.constant 0 : index
    %c0_6 = arith.constant 0 : index
    %6 = vector.load %arg4[%c0_5, %c0_6] : memref<32x64xbf16, #tpu.memory_space<vmem>>, vector<32x64xbf16>
    %cst = arith.constant dense<0.000000e+00> : vector<8x64xf32>
    %7 = tpu.matmul %5, %6, %cst {dimension_numbers = #tpu.dot_dimension_numbers<[1], [0], [0], [1], [0, 0, 1, 1], [], []>} : vector<8x32xbf16>, vector<32x64xbf16>, vector<8x64xf32> -> vector<8x64xf32>
    %c0_7 = arith.constant 0 : index
    %c0_8 = arith.constant 0 : index
    %8 = vector.load %arg5[%c0_7, %c0_8] : memref<1x64xf32, #tpu.memory_space<vmem>>, vector<1x64xf32>
    %9 = vector.broadcast %8 : vector<1x64xf32> to vector<8x64xf32>
    %10 = arith.addf %7, %9 : vector<8x64xf32>
    %11 = arith.truncf %1 : vector<8x32xf32> to vector<8x32xbf16>
    %c0_9 = arith.constant 0 : index
    %c0_10 = arith.constant 0 : index
    %12 = vector.load %arg6[%c0_9, %c0_10] : memref<32x32xbf16, #tpu.memory_space<vmem>>, vector<32x32xbf16>
    %cst_11 = arith.constant dense<0.000000e+00> : vector<8x32xf32>
    %13 = tpu.matmul %11, %12, %cst_11 {dimension_numbers = #tpu.dot_dimension_numbers<[1], [0], [0], [1], [0, 0, 1, 1], [], []>} : vector<8x32xbf16>, vector<32x32xbf16>, vector<8x32xf32> -> vector<8x32xf32>
    %c0_12 = arith.constant 0 : index
    %c0_13 = arith.constant 0 : index
    %14 = vector.load %arg7[%c0_12, %c0_13] : memref<1x32xf32, #tpu.memory_space<vmem>>, vector<1x32xf32>
    %15 = vector.broadcast %14 : vector<1x32xf32> to vector<8x32xf32>
    %16 = arith.addf %13, %15 : vector<8x32xf32>
    %17 = vector.extract_strided_slice %10 {offsets = [0, 0], sizes = [8, 32], strides = [1, 1]} : vector<8x64xf32> to vector<8x32xf32>
    %c0_14 = arith.constant 0 : index
    %c0_15 = arith.constant 0 : index
    %c0_16 = arith.constant 0 : index
    %18 = vector.load %arg8[%c0_14, %c0_15, %c0_16] : memref<1x8x32xf32, #tpu.memory_space<vmem>>, vector<1x8x32xf32>
    %19 = vector.shape_cast %18 : vector<1x8x32xf32> to vector<8x32xf32>
    %20 = vector.shape_cast %17 : vector<8x32xf32> to vector<1x8x32xf32>
    tpu.vector_store %arg8[%c0_14, %c0_15, %c0_16], %20 {strides = array<i32>} : memref<1x8x32xf32, #tpu.memory_space<vmem>>, vector<1x8x32xf32>,
    %21 = vector.extract_strided_slice %10 {offsets = [0, 32], sizes = [8, 32], strides = [1, 1]} : vector<8x64xf32> to vector<8x32xf32>
    %c0_17 = arith.constant 0 : index
    %c0_18 = arith.constant 0 : index
    %c0_19 = arith.constant 0 : index
    %22 = vector.load %arg9[%c0_17, %c0_18, %c0_19] : memref<1x8x32xf32, #tpu.memory_space<vmem>>, vector<1x8x32xf32>
    %23 = vector.shape_cast %22 : vector<1x8x32xf32> to vector<8x32xf32>
    %24 = vector.shape_cast %21 : vector<8x32xf32> to vector<1x8x32xf32>
    tpu.vector_store %arg9[%c0_17, %c0_18, %c0_19], %24 {strides = array<i32>} : memref<1x8x32xf32, #tpu.memory_space<vmem>>, vector<1x8x32xf32>,
    %c0_20 = arith.constant 0 : index
    %c0_21 = arith.constant 0 : index
    %c0_22 = arith.constant 0 : index
    %25 = vector.load %arg10[%c0_20, %c0_21, %c0_22] : memref<1x8x32xf32, #tpu.memory_space<vmem>>, vector<1x8x32xf32>
    %26 = vector.shape_cast %25 : vector<1x8x32xf32> to vector<8x32xf32>
    %27 = vector.shape_cast %16 : vector<8x32xf32> to vector<1x8x32xf32>
    tpu.vector_store %arg10[%c0_20, %c0_21, %c0_22], %27 {strides = array<i32>} : memref<1x8x32xf32, #tpu.memory_space<vmem>>, vector<1x8x32xf32>,
    return
  }
  func.func @transform_0(%arg0: i32, %arg1: i32) -> (i32, i32, i32) {
    %c0_i32 = arith.constant 0 : i32
    %c0_i32_0 = arith.constant 0 : i32
    return %arg0, %arg1, %c0_i32 : i32, i32, i32
  }
  func.func @transform_1(%arg0: i32, %arg1: i32) -> (i32, i32, i32) {
    %c0_i32 = arith.constant 0 : i32
    %c0_i32_0 = arith.constant 0 : i32
    return %arg0, %arg1, %c0_i32 : i32, i32, i32
  }
  func.func @transform_2(%arg0: i32, %arg1: i32) -> (i32, i32) {
    %c0_i32 = arith.constant 0 : i32
    %c0_i32_0 = arith.constant 0 : i32
    %c0_i32_1 = arith.constant 0 : i32
    return %c0_i32, %c0_i32_0 : i32, i32
  }
  func.func @transform_3(%arg0: i32, %arg1: i32) -> (i32, i32) {
    %c0_i32 = arith.constant 0 : i32
    %c0_i32_0 = arith.constant 0 : i32
    %c0_i32_1 = arith.constant 0 : i32
    return %c0_i32, %c0_i32_0 : i32, i32
  }
  func.func @transform_4(%arg0: i32, %arg1: i32) -> (i32, i32) {
    %c0_i32 = arith.constant 0 : i32
    %c0_i32_0 = arith.constant 0 : i32
    %c0_i32_1 = arith.constant 0 : i32
    return %c0_i32, %c0_i32_0 : i32, i32
  }
  func.func @transform_5(%arg0: i32, %arg1: i32) -> (i32, i32) {
    %c0_i32 = arith.constant 0 : i32
    %c0_i32_0 = arith.constant 0 : i32
    %c0_i32_1 = arith.constant 0 : i32
    return %c0_i32, %c0_i32_0 : i32, i32
  }
  func.func @transform_6(%arg0: i32, %arg1: i32) -> (i32, i32, i32) {
    %c0_i32 = arith.constant 0 : i32
    %c0_i32_0 = arith.constant 0 : i32
    return %arg0, %arg1, %c0_i32 : i32, i32, i32
  }
  func.func @transform_7(%arg0: i32, %arg1: i32) -> (i32, i32, i32) {
    %c0_i32 = arith.constant 0 : i32
    %c0_i32_0 = arith.constant 0 : i32
    return %arg0, %arg1, %c0_i32 : i32, i32, i32
  }
  func.func @transform_8(%arg0: i32, %arg1: i32) -> (i32, i32, i32) {
    %c0_i32 = arith.constant 0 : i32
    %c0_i32_0 = arith.constant 0 : i32
    return %arg0, %arg1, %c0_i32 : i32, i32, i32
  }
}

module attributes {stable_mosaic.version = 11 : i64} {
  func.func @qkv_proj_kernel(%arg0: i32, %arg1: i32, %arg2: memref<1x8x32xf32, #tpu.memory_space<vmem>>, %arg3: memref<1x8x32xf32, #tpu.memory_space<vmem>>, %arg4: memref<32x64xbf16, #tpu.memory_space<vmem>>, %arg5: memref<1x64xf32, #tpu.memory_space<vmem>>, %arg6: memref<32x32xbf16, #tpu.memory_space<vmem>>, %arg7: memref<1x32xf32, #tpu.memory_space<vmem>>, %arg8: memref<1x8x32xf32, #tpu.memory_space<vmem>>, %arg9: memref<1x8x32xf32, #tpu.memory_space<vmem>>, %arg10: memref<1x8x32xf32, #tpu.memory_space<vmem>>) attributes {dimension_semantics = [#tpu.dimension_semantics<parallel>, #tpu.dimension_semantics<parallel>], iteration_bounds = array<i64: 2, 2>, scalar_prefetch = 0 : i64, scratch_operands = 0 : i64, tpu.core_type = #tpu.core_type<tc>, window_params = [{transform_indices = @transform_0, window_bounds = array<i64: 1, 8, 32>}, {transform_indices = @transform_1, window_bounds = array<i64: 1, 8, 32>}, {pipeline_mode = #tpu.pipeline_mode<synchronous>, transform_indices = @transform_2, window_bounds = array<i64: 32, 64>}, {pipeline_mode = #tpu.pipeline_mode<synchronous>, transform_indices = @transform_3, window_bounds = array<i64: 1, 64>}, {pipeline_mode = #tpu.pipeline_mode<synchronous>, transform_indices = @transform_4, window_bounds = array<i64: 32, 32>}, {pipeline_mode = #tpu.pipeline_mode<synchronous>, transform_indices = @transform_5, window_bounds = array<i64: 1, 32>}, {transform_indices = @transform_6, window_bounds = array<i64: 1, 8, 32>}, {transform_indices = @transform_7, window_bounds = array<i64: 1, 8, 32>}, {transform_indices = @transform_8, window_bounds = array<i64: 1, 8, 32>}]} {
    %c0 = arith.constant 0 : index
    %c0_0 = arith.constant 0 : index
    %c0_1 = arith.constant 0 : index
    %0 = vector.load %arg2[%c0, %c0_0, %c0_1] : memref<1x8x32xf32, #tpu.memory_space<vmem>>, vector<1x8x32xf32>
    %1 = vector.shape_cast %0 : vector<1x8x32xf32> to vector<8x32xf32>
    %c0_2 = arith.constant 0 : index
    %c0_3 = arith.constant 0 : index
    %c0_4 = arith.constant 0 : index
    %2 = vector.load %arg3[%c0_2, %c0_3, %c0_4] : memref<1x8x32xf32, #tpu.memory_space<vmem>>, vector<1x8x32xf32>
    %3 = vector.shape_cast %2 : vector<1x8x32xf32> to vector<8x32xf32>
    %4 = arith.addf %1, %3 : vector<8x32xf32>
    %5 = arith.truncf %4 : vector<8x32xf32> to vector<8x32xbf16>
    %c0_5 = arith.constant 0 : index
    %c0_6 = arith.constant 0 : index
    %6 = vector.load %arg4[%c0_5, %c0_6] : memref<32x64xbf16, #tpu.memory_space<vmem>>, vector<32x64xbf16>
    %cst = arith.constant dense<0.000000e+00> : vector<8x64xf32>
    %7 = tpu.matmul %5, %6, %cst {dimension_numbers = #tpu.dot_dimension_numbers<[1], [0], [0], [1], [0, 0, 1, 1], [], []>} : vector<8x32xbf16>, vector<32x64xbf16>, vector<8x64xf32> -> vector<8x64xf32>
    %c0_7 = arith.constant 0 : index
    %c0_8 = arith.constant 0 : index
    %8 = vector.load %arg5[%c0_7, %c0_8] : memref<1x64xf32, #tpu.memory_space<vmem>>, vector<1x64xf32>
    %9 = vector.broadcast %8 : vector<1x64xf32> to vector<8x64xf32>
    %10 = arith.addf %7, %9 : vector<8x64xf32>
    %11 = arith.truncf %1 : vector<8x32xf32> to vector<8x32xbf16>
    %c0_9 = arith.constant 0 : index
    %c0_10 = arith.constant 0 : index
    %12 = vector.load %arg6[%c0_9, %c0_10] : memref<32x32xbf16, #tpu.memory_space<vmem>>, vector<32x32xbf16>
    %cst_11 = arith.constant dense<0.000000e+00> : vector<8x32xf32>
    %13 = tpu.matmul %11, %12, %cst_11 {dimension_numbers = #tpu.dot_dimension_numbers<[1], [0], [0], [1], [0, 0, 1, 1], [], []>} : vector<8x32xbf16>, vector<32x32xbf16>, vector<8x32xf32> -> vector<8x32xf32>
    %c0_12 = arith.constant 0 : index
    %c0_13 = arith.constant 0 : index
    %14 = vector.load %arg7[%c0_12, %c0_13] : memref<1x32xf32, #tpu.memory_space<vmem>>, vector<1x32xf32>
    %15 = vector.broadcast %14 : vector<1x32xf32> to vector<8x32xf32>
    %16 = arith.addf %13, %15 : vector<8x32xf32>
    %17 = vector.extract_strided_slice %10 {offsets = [0, 0], sizes = [8, 32], strides = [1, 1]} : vector<8x64xf32> to vector<8x32xf32>
    %c0_14 = arith.constant 0 : index
    %c0_15 = arith.constant 0 : index
    %c0_16 = arith.constant 0 : index
    %18 = vector.load %arg8[%c0_14, %c0_15, %c0_16] : memref<1x8x32xf32, #tpu.memory_space<vmem>>, vector<1x8x32xf32>
    %19 = vector.shape_cast %18 : vector<1x8x32xf32> to vector<8x32xf32>
    %20 = vector.shape_cast %17 : vector<8x32xf32> to vector<1x8x32xf32>
    tpu.vector_store %arg8[%c0_14, %c0_15, %c0_16], %20 {strides = array<i32>} : memref<1x8x32xf32, #tpu.memory_space<vmem>>, vector<1x8x32xf32>,
    %21 = vector.extract_strided_slice %10 {offsets = [0, 32], sizes = [8, 32], strides = [1, 1]} : vector<8x64xf32> to vector<8x32xf32>
    %c0_17 = arith.constant 0 : index
    %c0_18 = arith.constant 0 : index
    %c0_19 = arith.constant 0 : index
    %22 = vector.load %arg9[%c0_17, %c0_18, %c0_19] : memref<1x8x32xf32, #tpu.memory_space<vmem>>, vector<1x8x32xf32>
    %23 = vector.shape_cast %22 : vector<1x8x32xf32> to vector<8x32xf32>
    %24 = vector.shape_cast %21 : vector<8x32xf32> to vector<1x8x32xf32>
    tpu.vector_store %arg9[%c0_17, %c0_18, %c0_19], %24 {strides = array<i32>} : memref<1x8x32xf32, #tpu.memory_space<vmem>>, vector<1x8x32xf32>,
    %c0_20 = arith.constant 0 : index
    %c0_21 = arith.constant 0 : index
    %c0_22 = arith.constant 0 : index
    %25 = vector.load %arg10[%c0_20, %c0_21, %c0_22] : memref<1x8x32xf32, #tpu.memory_space<vmem>>, vector<1x8x32xf32>
    %26 = vector.shape_cast %25 : vector<1x8x32xf32> to vector<8x32xf32>
    %27 = vector.shape_cast %16 : vector<8x32xf32> to vector<1x8x32xf32>
    tpu.vector_store %arg10[%c0_20, %c0_21, %c0_22], %27 {strides = array<i32>} : memref<1x8x32xf32, #tpu.memory_space<vmem>>, vector<1x8x32xf32>,
    return
  }
  func.func @transform_0(%arg0: i32, %arg1: i32) -> (i32, i32, i32) {
    %c0_i32 = arith.constant 0 : i32
    %c0_i32_0 = arith.constant 0 : i32
    return %arg0, %arg1, %c0_i32 : i32, i32, i32
  }
  func.func @transform_1(%arg0: i32, %arg1: i32) -> (i32, i32, i32) {
    %c0_i32 = arith.constant 0 : i32
    %c0_i32_0 = arith.constant 0 : i32
    return %arg0, %arg1, %c0_i32 : i32, i32, i32
  }
  func.func @transform_2(%arg0: i32, %arg1: i32) -> (i32, i32) {
    %c0_i32 = arith.constant 0 : i32
    %c0_i32_0 = arith.constant 0 : i32
    %c0_i32_1 = arith.constant 0 : i32
    return %c0_i32, %c0_i32_0 : i32, i32
  }
  func.func @transform_3(%arg0: i32, %arg1: i32) -> (i32, i32) {
    %c0_i32 = arith.constant 0 : i32
    %c0_i32_0 = arith.constant 0 : i32
    %c0_i32_1 = arith.constant 0 : i32
    return %c0_i32, %c0_i32_0 : i32, i32
  }
  func.func @transform_4(%arg0: i32, %arg1: i32) -> (i32, i32) {
    %c0_i32 = arith.constant 0 : i32
    %c0_i32_0 = arith.constant 0 : i32
    %c0_i32_1 = arith.constant 0 : i32
    return %c0_i32, %c0_i32_0 : i32, i32
  }
  func.func @transform_5(%arg0: i32, %arg1: i32) -> (i32, i32) {
    %c0_i32 = arith.constant 0 : i32
    %c0_i32_0 = arith.constant 0 : i32
    %c0_i32_1 = arith.constant 0 : i32
    return %c0_i32, %c0_i32_0 : i32, i32
  }
  func.func @transform_6(%arg0: i32, %arg1: i32) -> (i32, i32, i32) {
    %c0_i32 = arith.constant 0 : i32
    %c0_i32_0 = arith.constant 0 : i32
    return %arg0, %arg1, %c0_i32 : i32, i32, i32
  }
  func.func @transform_7(%arg0: i32, %arg1: i32) -> (i32, i32, i32) {
    %c0_i32 = arith.constant 0 : i32
    %c0_i32_0 = arith.constant 0 : i32
    return %arg0, %arg1, %c0_i32 : i32, i32, i32
  }
  func.func @transform_8(%arg0: i32, %arg1: i32) -> (i32, i32, i32) {
    %c0_i32 = arith.constant 0 : i32
    %c0_i32_0 = arith.constant 0 : i32
    return %arg0, %arg1, %c0_i32 : i32, i32, i32
  }
}

</mosaic_0001>

<llo_original>
// kernel: tpu_custom_call.1
$region0: #{tpu_custom_call.1}
  #allocation0 [shape = 'u32[]', space=smem, size = 0x4, offset = 0x4, fixed_abs, tag = 'smem constant byte address 0x4 - core index']
  #allocation1 [shape = 'u32[72,128]{1,0:T(1,128)}', space=vmem, size = 0x9000, scoped, tag = 'internal scratch']
  %s0 = inlined_call_operand.hbm [shape: f32[2,16,32], index: 0, kind: input, shape index: {}]
  %s1 = inlined_call_operand.hbm [shape: f32[2,16,32], index: 1, kind: input, shape index: {}]
  %s2 = inlined_call_operand.hbm [shape: bf16[32,64], index: 2, kind: input, shape index: {}]
  %s3 = inlined_call_operand.vmem [shape: f32[1,64], index: 3, kind: input, shape index: {}]
  %s4 = inlined_call_operand.hbm [shape: bf16[32,32], index: 4, kind: input, shape index: {}]
  %s5 = inlined_call_operand.vmem [shape: f32[1,32], index: 5, kind: input, shape index: {}]
  %s6 = inlined_call_operand.hbm [shape: f32[2,16,32], index: 6, kind: output, shape index: {0}]
  %s7 = inlined_call_operand.hbm [shape: f32[2,16,32], index: 7, kind: output, shape index: {1}]
  %s8 = inlined_call_operand.hbm [shape: f32[2,16,32], index: 8, kind: output, shape index: {2}]
  %9 = xla_tuple %s6, %s7, %s8
  %s10 = sld [smem:[#allocation0]]
  $region89: #{tpu_custom_call.1} parent=0
    _
  %s12 = ssub.s32 1, %s10
  %s13 = scalar_select 0, %s12, %s10
  $region1: #{tpu_custom_call.1} parent=0
    #allocation2 [shape = 'u8[8192]{0}', space=vmem, size = 0x2000, scoped, tag = 'input window, operand 0']
    #allocation3 [shape = 's32[2]{0}', space=sflag, size = 0x8, scoped, tag = 'scoped memory for tpu_custom_call.1']
    #allocation4 [shape = 's32[2]{0}', space=sflag, size = 0x8, scoped, tag = 'scoped memory for tpu_custom_call.1']
    #allocation5 [shape = 'u8[8192]{0}', space=vmem, size = 0x2000, scoped, tag = 'input window, operand 1']
    #allocation6 [shape = 's32[2]{0}', space=sflag, size = 0x8, scoped, tag = 'scoped memory for tpu_custom_call.1']
    #allocation7 [shape = 'u8[8192]{0}', space=vmem, size = 0x2000, scoped, tag = 'input window, operand 2, single buffered']
    #allocation8 [shape = 'u8[8192]{0}', space=vmem, size = 0x2000, scoped, tag = 'input window, operand 4, single buffered']
    #allocation9 [shape = 's32[1]{0}', space=sflag, size = 0x4, scoped, tag = 'scoped memory for tpu_custom_call.1']
    #allocation10 [shape = 'u8[8192]{0}', space=vmem, size = 0x2000, scoped, tag = 'output window, operand 0']
    #allocation11 [shape = 'u8[8192]{0}', space=vmem, size = 0x2000, scoped, tag = 'output window, operand 1']
    #allocation12 [shape = 's32[2]{0}', space=sflag, size = 0x8, scoped, tag = 'scoped memory for tpu_custom_call.1']
    #allocation13 [shape = 'u8[8192]{0}', space=vmem, size = 0x2000, scoped, tag = 'output window, operand 2']
    %14 = vsyncpa [#allocation3], 0
    %s15 = scalar_lea.sflag [#allocation3], 1
    %16 = vsyncpa %s15, 0
    %17 = vsyncpa [#allocation6], 0
    %s18 = scalar_lea.sflag [#allocation6], 1
    %19 = vsyncpa %s18, 0
    %20 = vsyncpa [#allocation9], 0
    %21 = vsyncpa [#allocation4], 0
    %s22 = scalar_lea.sflag [#allocation4], 1
    %23 = vsyncpa %s22, 0
    %24 = vsyncpa [#allocation12], 0
    %s25 = scalar_lea.sflag [#allocation12], 1
    %26 = vsyncpa %s25, 0
    loop: start=0, step=1, limit=6
    $region2: #{tpu_custom_call.1} parent=1 // loop_pre_header
      _
    $region3: #{tpu_custom_call.1} parent=1 // loop_header
      %s28 = sphi 0, %s32
      %p29 = scmp.ge.s32.totalorder %s28, 6
      %s35 = sphi 0, %s47
      %s36 = sphi 0, %s43
      %s37 = sphi 0, %s35
      %s38 = sphi 0, %s36
      %s39 = sphi 0, %s37
      %s40 = sphi 0, %s38
      %s52 = sphi 0, %s54
      %s55 = sphi 0, %s52
      %s56 = sphi 0, %s55
      %s72 = sphi 0, %s56
      %s80 = sphi 0, %s82
      %s83 = sphi 0, %s80
      %s84 = sphi 0, %s83
      %s100 = sphi 0, %s84
      %s104 = sphi 0, %s104
      %s106 = sphi 0, %s104
      %s107 = sphi 0, %s106
      %s121 = sphi 0, %s107
      %s125 = sphi 0, %s125
      %s127 = sphi 0, %s125
      %s128 = sphi 0, %s127
      %s142 = sphi 0, %s128
      %s146 = sphi 0, %s146
      %s148 = sphi 0, %s146
      %s149 = sphi 0, %s148
      %s163 = sphi 0, %s149
      %s167 = sphi 0, %s167
      %s169 = sphi 0, %s167
      %s170 = sphi 0, %s169
      %s184 = sphi 0, %s170
      %s192 = sphi 0, %s194
      %s195 = sphi 0, %s192
      %s196 = sphi 0, %s195
      %s212 = sphi 0, %s196
      %s220 = sphi 0, %s222
      %s223 = sphi 0, %s220
      %s224 = sphi 0, %s223
      %s240 = sphi 0, %s224
      %s248 = sphi 0, %s250
      %s251 = sphi 0, %s248
      %s252 = sphi 0, %s251
      %s268 = sphi 0, %s252
    $region4: #{tpu_custom_call.1} parent=1 // loop_header_branch
      %31 = sbr.rel (%p29) target = $region8
    $region5: #{tpu_custom_call.1} parent=1 // loop_body
      %s33 = ssub.s32 %s28, 1
      %s34 = ssub.s32 %s28, 2
      %s41 = sadd.s32 1, %s36
      %p42 = scmp.ge.s32.totalorder %s41, 2
      %s43 = scalar_select %p42, 0, %s41
      %s44 = sadd.s32 1, %s35
      %s45 = scalar_select %p42, %s44, %s35
      %p46 = scmp.ge.s32.totalorder %s45, 2
      %s47 = scalar_select %p46, 0, %s45
      %s48 = ssub.s32 %s35, %s47
      %s49 = ssub.s32 %s36, %s43
      %s50 = sor.u32 %s48, %s49
      %p51 = scmp.eq.s32.totalorder %s50, 0
      %s53 = sadd.s32 %s52, 1
      %s54 = scalar_select %p51, %s52, %s53
      %p57 = pneg %p51
      %p58 = scmp.eq.s32.totalorder %s28, 3
      %p59 = por %p57, %p58
      %p60 = scmp.ne.s32.totalorder %s52, %s55
      %p61 = scmp.eq.s32.totalorder %s28, 0
      %p62 = por %p60, %p61
      %p63 = scmp.ne.s32.totalorder %s52, %s55
      %p64 = scmp.eq.s32.totalorder %s33, 3
      %p65 = por %p63, %p64
      %p66 = scmp.ne.s32.totalorder %s55, %s56
      %p67 = scmp.eq.s32.totalorder %s33, 0
      %p68 = por %p66, %p67
      %p69 = scmp.ne.s32.totalorder %s55, %s56
      %p70 = scmp.eq.s32.totalorder %s34, 3
      %p71 = por %p69, %p70
      %p73 = scmp.ne.s32.totalorder %s56, %s72
      %p74 = scmp.eq.s32.totalorder %s34, 0
      %p75 = por %p73, %p74
      %s76 = ssub.s32 %s35, %s47
      %s77 = ssub.s32 %s36, %s43
      %s78 = sor.u32 %s76, %s77
      %p79 = scmp.eq.s32.totalorder %s78, 0
      %s81 = sadd.s32 %s80, 1
      %s82 = scalar_select %p79, %s80, %s81
      %p85 = pneg %p79
      %p86 = scmp.eq.s32.totalorder %s28, 3
      %p87 = por %p85, %p86
      %p88 = scmp.ne.s32.totalorder %s80, %s83
      %p89 = scmp.eq.s32.totalorder %s28, 0
      %p90 = por %p88, %p89
      %p91 = scmp.ne.s32.totalorder %s80, %s83
      %p92 = scmp.eq.s32.totalorder %s33, 3
      %p93 = por %p91, %p92
      %p94 = scmp.ne.s32.totalorder %s83, %s84
      %p95 = scmp.eq.s32.totalorder %s33, 0
      %p96 = por %p94, %p95
      %p97 = scmp.ne.s32.totalorder %s83, %s84
      %p98 = scmp.eq.s32.totalorder %s34, 3
      %p99 = por %p97, %p98
      %p101 = scmp.ne.s32.totalorder %s84, %s100
      %p102 = scmp.eq.s32.totalorder %s34, 0
      %p103 = por %p101, %p102
      %s105 = sadd.s32 %s104, 1
      %p108 = scmp.eq.s32.totalorder %s28, 3
      %p109 = scmp.ne.s32.totalorder %s104, %s106
      %p110 = scmp.eq.s32.totalorder %s28, 0
      %p111 = por %p109, %p110
      %p112 = scmp.ne.s32.totalorder %s104, %s106
      %p113 = scmp.eq.s32.totalorder %s33, 3
      %p114 = por %p112, %p113
      %p115 = scmp.ne.s32.totalorder %s106, %s107
      %p116 = scmp.eq.s32.totalorder %s33, 0
      %p117 = por %p115, %p116
      %p118 = scmp.ne.s32.totalorder %s106, %s107
      %p119 = scmp.eq.s32.totalorder %s34, 3
      %p120 = por %p118, %p119
      %p122 = scmp.ne.s32.totalorder %s107, %s121
      %p123 = scmp.eq.s32.totalorder %s34, 0
      %p124 = por %p122, %p123
      %s126 = sadd.s32 %s125, 1
      %p129 = scmp.eq.s32.totalorder %s28, 3
      %p130 = scmp.ne.s32.totalorder %s125, %s127
      %p131 = scmp.eq.s32.totalorder %s28, 0
      %p132 = por %p130, %p131
      %p133 = scmp.ne.s32.totalorder %s125, %s127
      %p134 = scmp.eq.s32.totalorder %s33, 3
      %p135 = por %p133, %p134
      %p136 = scmp.ne.s32.totalorder %s127, %s128
      %p137 = scmp.eq.s32.totalorder %s33, 0
      %p138 = por %p136, %p137
      %p139 = scmp.ne.s32.totalorder %s127, %s128
      %p140 = scmp.eq.s32.totalorder %s34, 3
      %p141 = por %p139, %p140
      %p143 = scmp.ne.s32.totalorder %s128, %s142
      %p144 = scmp.eq.s32.totalorder %s34, 0
      %p145 = por %p143, %p144
      %s147 = sadd.s32 %s146, 1
      %p150 = scmp.eq.s32.totalorder %s28, 3
      %p151 = scmp.ne.s32.totalorder %s146, %s148
      %p152 = scmp.eq.s32.totalorder %s28, 0
      %p153 = por %p151, %p152
      %p154 = scmp.ne.s32.totalorder %s146, %s148
      %p155 = scmp.eq.s32.totalorder %s33, 3
      %p156 = por %p154, %p155
      %p157 = scmp.ne.s32.totalorder %s148, %s149
      %p158 = scmp.eq.s32.totalorder %s33, 0
      %p159 = por %p157, %p158
      %p160 = scmp.ne.s32.totalorder %s148, %s149
      %p161 = scmp.eq.s32.totalorder %s34, 3
      %p162 = por %p160, %p161
      %p164 = scmp.ne.s32.totalorder %s149, %s163
      %p165 = scmp.eq.s32.totalorder %s34, 0
      %p166 = por %p164, %p165
      %s168 = sadd.s32 %s167, 1
      %p171 = scmp.eq.s32.totalorder %s28, 3
      %p172 = scmp.ne.s32.totalorder %s167, %s169
      %p173 = scmp.eq.s32.totalorder %s28, 0
      %p174 = por %p172, %p173
      %p175 = scmp.ne.s32.totalorder %s167, %s169
      %p176 = scmp.eq.s32.totalorder %s33, 3
      %p177 = por %p175, %p176
      %p178 = scmp.ne.s32.totalorder %s169, %s170
      %p179 = scmp.eq.s32.totalorder %s33, 0
      %p180 = por %p178, %p179
      %p181 = scmp.ne.s32.totalorder %s169, %s170
      %p182 = scmp.eq.s32.totalorder %s34, 3
      %p183 = por %p181, %p182
      %p185 = scmp.ne.s32.totalorder %s170, %s184
      %p186 = scmp.eq.s32.totalorder %s34, 0
      %p187 = por %p185, %p186
      %s188 = ssub.s32 %s35, %s47
      %s189 = ssub.s32 %s36, %s43
      %s190 = sor.u32 %s188, %s189
      %p191 = scmp.eq.s32.totalorder %s190, 0
      %s193 = sadd.s32 %s192, 1
      %s194 = scalar_select %p191, %s192, %s193
      %p197 = pneg %p191
      %p198 = scmp.eq.s32.totalorder %s28, 3
      %p199 = por %p197, %p198
      %p200 = scmp.ne.s32.totalorder %s192, %s195
      %p201 = scmp.eq.s32.totalorder %s28, 0
      %p202 = por %p200, %p201
      %p203 = scmp.ne.s32.totalorder %s192, %s195
      %p204 = scmp.eq.s32.totalorder %s33, 3
      %p205 = por %p203, %p204
      %p206 = scmp.ne.s32.totalorder %s195, %s196
      %p207 = scmp.eq.s32.totalorder %s33, 0
      %p208 = por %p206, %p207
      %p209 = scmp.ne.s32.totalorder %s195, %s196
      %p210 = scmp.eq.s32.totalorder %s34, 3
      %p211 = por %p209, %p210
      %p213 = scmp.ne.s32.totalorder %s196, %s212
      %p214 = scmp.eq.s32.totalorder %s34, 0
      %p215 = por %p213, %p214
      %s216 = ssub.s32 %s35, %s47
      %s217 = ssub.s32 %s36, %s43
      %s218 = sor.u32 %s216, %s217
      %p219 = scmp.eq.s32.totalorder %s218, 0
      %s221 = sadd.s32 %s220, 1
      %s222 = scalar_select %p219, %s220, %s221
      %p225 = pneg %p219
      %p226 = scmp.eq.s32.totalorder %s28, 3
      %p227 = por %p225, %p226
      %p228 = scmp.ne.s32.totalorder %s220, %s223
      %p229 = scmp.eq.s32.totalorder %s28, 0
      %p230 = por %p228, %p229
      %p231 = scmp.ne.s32.totalorder %s220, %s223
      %p232 = scmp.eq.s32.totalorder %s33, 3
      %p233 = por %p231, %p232
      %p234 = scmp.ne.s32.totalorder %s223, %s224
      %p235 = scmp.eq.s32.totalorder %s33, 0
      %p236 = por %p234, %p235
      %p237 = scmp.ne.s32.totalorder %s223, %s224
      %p238 = scmp.eq.s32.totalorder %s34, 3
      %p239 = por %p237, %p238
      %p241 = scmp.ne.s32.totalorder %s224, %s240
      %p242 = scmp.eq.s32.totalorder %s34, 0
      %p243 = por %p241, %p242
      %s244 = ssub.s32 %s35, %s47
      %s245 = ssub.s32 %s36, %s43
      %s246 = sor.u32 %s244, %s245
      %p247 = scmp.eq.s32.totalorder %s246, 0
      %s249 = sadd.s32 %s248, 1
      %s250 = scalar_select %p247, %s248, %s249
      %p253 = pneg %p247
      %p254 = scmp.eq.s32.totalorder %s28, 3
      %p255 = por %p253, %p254
      %p256 = scmp.ne.s32.totalorder %s248, %s251
      %p257 = scmp.eq.s32.totalorder %s28, 0
      %p258 = por %p256, %p257
      %p259 = scmp.ne.s32.totalorder %s248, %s251
      %p260 = scmp.eq.s32.totalorder %s33, 3
      %p261 = por %p259, %p260
      %p262 = scmp.ne.s32.totalorder %s251, %s252
      %p263 = scmp.eq.s32.totalorder %s33, 0
      %p264 = por %p262, %p263
      %p265 = scmp.ne.s32.totalorder %s251, %s252
      %p266 = scmp.eq.s32.totalorder %s34, 3
      %p267 = por %p265, %p266
      %p269 = scmp.ne.s32.totalorder %s252, %s268
      %p270 = scmp.eq.s32.totalorder %s34, 0
      %p271 = por %p269, %p270
      %p272 = scmp.le.s32.totalorder 1, %s28
      %p273 = scmp.lt.s32.totalorder %s28, 5
      %p274 = pnand %p272, %p273
      %p275 = pneg %p274
      // Predicated region
      $region9: #{tpu_custom_call.1} parent=5 // pred_check
        _
      $region10: #{tpu_custom_call.1} parent=5 // pred_check_branch
        %277 = sbr.rel (%p274) target = $region12
      $region11: #{tpu_custom_call.1} parent=5 // pred_region
        %s278 = ssub.s32 %s28, 1
        // Predicated region
        $region13: #{tpu_custom_call.1} parent=11 // pred_check
          %p279 = pneg %p117
        $region14: #{tpu_custom_call.1} parent=11 // pred_check_branch
          %281 = sbr.rel (%p279) target = $region16
        $region15: #{tpu_custom_call.1} parent=11 // pred_region
          %283 = vsyncadd [#allocation6], 0
          %s284 = sshll.u32 %s2, 4
          %s285 = int_to_ptr.hbm [resolvable:$true] %s284
          %s286 = sshll.u32 [#allocation7], 4
          %s287 = int_to_ptr.vmem [resolvable:$true] %s286
          %292 = dma.hbm_to_vmem [thread:$0]  %s285, 256, %s287, [#allocation6], 64, 64, 4
        $region16: #{tpu_custom_call.1} parent=11 // pred_fallthru
          _
        // Predicated region
        $region17: #{tpu_custom_call.1} parent=11 // pred_check
          %p293 = pneg %p138
        $region18: #{tpu_custom_call.1} parent=11 // pred_check_branch
          %295 = sbr.rel (%p293) target = $region20
        $region19: #{tpu_custom_call.1} parent=11 // pred_region
          _
        $region20: #{tpu_custom_call.1} parent=11 // pred_fallthru
          _
        // Predicated region
        $region21: #{tpu_custom_call.1} parent=11 // pred_check
          %p296 = pneg %p159
        $region22: #{tpu_custom_call.1} parent=11 // pred_check_branch
          %298 = sbr.rel (%p296) target = $region24
        $region23: #{tpu_custom_call.1} parent=11 // pred_region
          %300 = vsyncadd [#allocation9], 0
          %s301 = sshll.u32 %s4, 4
          %s302 = int_to_ptr.hbm [resolvable:$true] %s301
          %s303 = sshll.u32 [#allocation8], 4
          %s304 = int_to_ptr.vmem [resolvable:$true] %s303
          %309 = dma.hbm_to_vmem [thread:$0]  %s302, 256, %s304, [#allocation9], 64, 64, 4
        $region24: #{tpu_custom_call.1} parent=11 // pred_fallthru
          _
        // Predicated region
        $region25: #{tpu_custom_call.1} parent=11 // pred_check
          %p310 = pneg %p180
        $region26: #{tpu_custom_call.1} parent=11 // pred_check_branch
          %312 = sbr.rel (%p310) target = $region28
        $region27: #{tpu_custom_call.1} parent=11 // pred_region
          _
        $region28: #{tpu_custom_call.1} parent=11 // pred_fallthru
          _
      $region12: #{tpu_custom_call.1} parent=5 // pred_fallthru
        _
      %p313 = scmp.lt.s32.totalorder %s28, 4
      // Predicated region
      $region29: #{tpu_custom_call.1} parent=5 // pred_check
        %p314 = pneg %p313
      $region30: #{tpu_custom_call.1} parent=5 // pred_check_branch
        %316 = sbr.rel (%p314) target = $region32
      $region31: #{tpu_custom_call.1} parent=5 // pred_region
        // Predicated region
        $region33: #{tpu_custom_call.1} parent=31 // pred_check
          %p317 = pneg %p62
        $region34: #{tpu_custom_call.1} parent=31 // pred_check_branch
          %319 = sbr.rel (%p317) target = $region36
        $region35: #{tpu_custom_call.1} parent=31 // pred_region
          %s320 = sand.u32 %s52, 1
          %s321 = scalar_lea.sflag [#allocation3], %s320
          %s322 = sand.u32 %s52, 1
          %s323 = smul.addr %s322, 8
          %s324 = scalar_lea.vmem [#allocation2], %s323
          %326 = vsyncadd %s321, 0
          %s327 = smul.addr %s35, 2
          %s328 = sadd.s32 %s36, %s327
          %s329 = smul.addr %s328, 8
          %s330 = scalar_lea.hbm %s0, %s329
          %s332 = sshll.u32 %s330, 4
          %s333 = int_to_ptr.hbm [resolvable:$true] %s332
          %s334 = sshll.u32 %s324, 4
          %s335 = int_to_ptr.vmem [resolvable:$true] %s334
          %337 = dma.hbm_to_vmem [thread:$0]  %s333, 128, %s335, %s321
        $region36: #{tpu_custom_call.1} parent=31 // pred_fallthru
          _
        // Predicated region
        $region37: #{tpu_custom_call.1} parent=31 // pred_check
          %p338 = pneg %p90
        $region38: #{tpu_custom_call.1} parent=31 // pred_check_branch
          %340 = sbr.rel (%p338) target = $region40
        $region39: #{tpu_custom_call.1} parent=31 // pred_region
          %s341 = sand.u32 %s28, 1
          %s342 = scalar_lea.sflag [#allocation6], %s341
          %s343 = sand.u32 %s80, 1
          %s344 = smul.addr %s343, 8
          %s345 = scalar_lea.vmem [#allocation5], %s344
          %347 = vsyncadd %s342, 0
          %s348 = smul.addr %s35, 2
          %s349 = sadd.s32 %s36, %s348
          %s350 = smul.addr %s349, 8
          %s351 = scalar_lea.hbm %s1, %s350
          %s353 = sshll.u32 %s351, 4
          %s354 = int_to_ptr.hbm [resolvable:$true] %s353
          %s355 = sshll.u32 %s345, 4
          %s356 = int_to_ptr.vmem [resolvable:$true] %s355
          %358 = dma.hbm_to_vmem [thread:$0]  %s354, 128, %s356, %s342
        $region40: #{tpu_custom_call.1} parent=31 // pred_fallthru
          _
      $region32: #{tpu_custom_call.1} parent=5 // pred_fallthru
        _
      %p359 = scmp.le.s32.totalorder 1, %s28
      %p360 = scmp.lt.s32.totalorder %s28, 5
      %p361 = pnand %p359, %p360
      %p362 = pneg %p361
      // Predicated region
      $region41: #{tpu_custom_call.1} parent=5 // pred_check
        _
      $region42: #{tpu_custom_call.1} parent=5 // pred_check_branch
        %364 = sbr.rel (%p361) target = $region44
      $region43: #{tpu_custom_call.1} parent=5 // pred_region
        %s365 = ssub.s32 %s28, 1
        %s366 = sand.u32 %s55, 1
        %s367 = scalar_lea.sflag [#allocation3], %s366
        %s368 = sand.u32 %s55, 1
        %s369 = smul.addr %s368, 8
        %s370 = scalar_lea.vmem [#allocation2], %s369
        // Predicated region
        $region45: #{tpu_custom_call.1} parent=43 // pred_check
          %p371 = pneg %p68
        $region46: #{tpu_custom_call.1} parent=43 // pred_check_branch
          %373 = sbr.rel (%p371) target = $region48
        $region47: #{tpu_custom_call.1} parent=43 // pred_region
          %375 = dma.done %s367, 128
        $region48: #{tpu_custom_call.1} parent=43 // pred_fallthru
          _
        %s376 = sand.u32 %s33, 1
        %s377 = scalar_lea.sflag [#allocation6], %s376
        %s378 = sand.u32 %s83, 1
        %s379 = smul.addr %s378, 8
        %s380 = scalar_lea.vmem [#allocation5], %s379
        // Predicated region
        $region49: #{tpu_custom_call.1} parent=43 // pred_check
          %p381 = pneg %p96
        $region50: #{tpu_custom_call.1} parent=43 // pred_check_branch
          %383 = sbr.rel (%p381) target = $region52
        $region51: #{tpu_custom_call.1} parent=43 // pred_region
          %385 = dma.done %s377, 128
        $region52: #{tpu_custom_call.1} parent=43 // pred_fallthru
          _
        // Predicated region
        $region53: #{tpu_custom_call.1} parent=43 // pred_check
          %p386 = pneg %p117
        $region54: #{tpu_custom_call.1} parent=43 // pred_check_branch
          %388 = sbr.rel (%p386) target = $region56
        $region55: #{tpu_custom_call.1} parent=43 // pred_region
          %390 = dma.done [#allocation6], 256
        $region56: #{tpu_custom_call.1} parent=43 // pred_fallthru
          _
        // Predicated region
        $region57: #{tpu_custom_call.1} parent=43 // pred_check
          %p391 = pneg %p159
        $region58: #{tpu_custom_call.1} parent=43 // pred_check_branch
          %393 = sbr.rel (%p391) target = $region60
        $region59: #{tpu_custom_call.1} parent=43 // pred_region
          %395 = dma.done [#allocation9], 256
        $region60: #{tpu_custom_call.1} parent=43 // pred_fallthru
          _
        %s396 = sand.u32 %s55, 1
        %s397 = scalar_lea.sflag [#allocation3], %s396
        %s398 = sand.u32 %s55, 1
        %s399 = smul.addr %s398, 8
        %s400 = scalar_lea.vmem [#allocation2], %s399
        %p401 = pneg %p68
        %p402 = pneg %p65
        %s403 = sand.u32 %s33, 1
        %s404 = scalar_lea.sflag [#allocation6], %s403
        %s405 = sand.u32 %s83, 1
        %s406 = smul.addr %s405, 8
        %s407 = scalar_lea.vmem [#allocation5], %s406
        %p408 = pneg %p96
        %p409 = pneg %p93
        %p410 = pneg %p117
        %p411 = pneg %p114
        %p412 = pneg %p138
        %p413 = pneg %p135
        %p414 = pneg %p159
        %p415 = pneg %p156
        %p416 = pneg %p180
        %p417 = pneg %p177
        %p418 = pneg %p208
        %p419 = pneg %p205
        %s420 = sand.u32 %s195, 1
        %s421 = scalar_lea.sflag [#allocation4], %s420
        %s422 = sand.u32 %s195, 1
        %s423 = smul.addr %s422, 8
        %s424 = scalar_lea.vmem [#allocation10], %s423
        %p425 = pneg %p236
        %p426 = pneg %p233
        %s427 = sand.u32 %s33, 1
        %s428 = scalar_lea.sflag [#allocation12], %s427
        %s429 = sand.u32 %s223, 1
        %s430 = smul.addr %s429, 8
        %s431 = scalar_lea.vmem [#allocation11], %s430
        %p432 = pneg %p264
        %p433 = pneg %p261
        %s434 = sand.u32 %s33, 1
        %s435 = scalar_lea.sflag [#allocation12], %s434
        %s436 = sand.u32 %s251, 1
        %s437 = smul.addr %s436, 8
        %s438 = scalar_lea.vmem [#allocation13], %s437
        %v440 = vld [vmem:[%s370] sm:$0xff]
        %v441 = vld [vmem:[%s380] sm:$0xff]
        %v442 = vadd.f32 %v440, %v441
        %v443 = vpack.c.bf16 %v442, %v442
        %v444 = vld [vmem:[#allocation7] sm:$0xf]
        %v445 = vld [vmem:[#allocation7 + $0x4] sm:$0xf]
        %v446 = vld [vmem:[#allocation7 + $0x8] sm:$0xf]
        %v447 = vld [vmem:[#allocation7 + $0xc] sm:$0xf]
        %v448 = vld [vmem:[%s3] sm:$0x1]
        %v450 = vperm.slane %v448, 0
        %v456 = vunpack.c.l.b16 %v444
        %v457 = vunpack.c.l.b16 %v445
        %v458 = vunpack.c.l.b16 %v446
        %v459 = vunpack.c.l.b16 %v447
        %v460 = vpack.c.b16 %v457, %v456
        %v461 = vpack.c.b16 %v459, %v458
        %vm464 = vcmask 261120
        %v466 = vsel %vm464, %v443, 0
        %468 = vmatpush.bf16.msra.mxu0 0
        %469 = vmatpush.bf16.msra.mxu0 0
        %470 = vmatpush.bf16.msra.mxu0 0
        %471 = vmatpush.bf16.msra.mxu0 0
        %472 = vmatpush.bf16.msra.mxu0 0
        %473 = vmatpush.bf16.msra.mxu0 0
        %474 = vmatpush.bf16.msra.mxu0 %v461
        %475 = vmatpush.bf16.msra.mxu0 %v460
        %476 = vmatmul.bf16.gmra.mxu0 %v466
        %v477 = vpop.f32.mrf.mxu0
        %v478 = vadd.f32 %v450, %v477
        %v479 = vpop.f32.mrf.mxu0
        %480 = vdwg.mxu0
        %v481 = vpack.c.bf16 %v440, %v440
        %v482 = vld [vmem:[#allocation8] sm:$0xf]
        %v483 = vld [vmem:[#allocation8 + $0x4] sm:$0xf]
        %v484 = vld [vmem:[#allocation8 + $0x8] sm:$0xf]
        %v485 = vld [vmem:[#allocation8 + $0xc] sm:$0xf]
        %v486 = vld [vmem:[%s5] sm:$0x1]
        %v488 = vperm.slane %v486, 0
        %v494 = vunpack.c.l.b16 %v482
        %v495 = vunpack.c.l.b16 %v483
        %v496 = vunpack.c.l.b16 %v484
        %v497 = vunpack.c.l.b16 %v485
        %v498 = vpack.c.b16 %v495, %v494
        %v499 = vpack.c.b16 %v497, %v496
        %v503 = vsel %vm464, %v481, 0
        %505 = vmatpush.bf16.msra.mxu0 0
        %506 = vmatpush.bf16.msra.mxu0 0
        %507 = vmatpush.bf16.msra.mxu0 0
        %508 = vmatpush.bf16.msra.mxu0 0
        %509 = vmatpush.bf16.msra.mxu0 0
        %510 = vmatpush.bf16.msra.mxu0 0
        %511 = vmatpush.bf16.msra.mxu0 %v499
        %512 = vmatpush.bf16.msra.mxu0 %v498
        %513 = vmatmul.bf16.gmra.mxu0 %v503
        %v514 = vpop.f32.mrf.mxu0
        %v515 = vadd.f32 %v488, %v514
        %v516 = vpop.f32.mrf.mxu0
        %517 = vdwg.mxu0
        %518 = vst.msk [vmem:[%s424] sm:$0xff] %vm464, %v478
        %520 = vrot.lane.b32.xlu0 %v478, 96
        %v521 = vpop.permute.xlu0 %520
        %523 = vst.msk [vmem:[%s431] sm:$0xff] %vm464, %v521
        %524 = vst.msk [vmem:[%s438] sm:$0xff] %vm464, %v515
        %s525 = sand.u32 %s195, 1
        %s526 = scalar_lea.sflag [#allocation4], %s525
        %s527 = sand.u32 %s195, 1
        %s528 = smul.addr %s527, 8
        %s529 = scalar_lea.vmem [#allocation10], %s528
        %s530 = sand.u32 %s33, 1
        %s531 = scalar_lea.sflag [#allocation12], %s530
        %s532 = sand.u32 %s223, 1
        %s533 = smul.addr %s532, 8
        %s534 = scalar_lea.vmem [#allocation11], %s533
        %s535 = sand.u32 %s33, 1
        %s536 = scalar_lea.sflag [#allocation12], %s535
        %s537 = sand.u32 %s251, 1
        %s538 = smul.addr %s537, 8
        %s539 = scalar_lea.vmem [#allocation13], %s538
        // Predicated region
        $region61: #{tpu_custom_call.1} parent=43 // pred_check
          %p540 = pneg %p205
        $region62: #{tpu_custom_call.1} parent=43 // pred_check_branch
          %542 = sbr.rel (%p540) target = $region64
        $region63: #{tpu_custom_call.1} parent=43 // pred_region
          %544 = vsyncadd %s526, 0
          %s545 = smul.addr %s37, 2
          %s546 = sadd.s32 %s38, %s545
          %s547 = smul.addr %s546, 8
          %s548 = scalar_lea.hbm %s6, %s547
          %s550 = sshll.u32 %s529, 4
          %s551 = int_to_ptr.vmem [resolvable:$true] %s550
          %s552 = sshll.u32 %s548, 4
          %s553 = int_to_ptr.hbm [resolvable:$true] %s552
          %555 = dma.vmem_to_hbm [thread:$0]  %s551, 128, %s553, %s526
        $region64: #{tpu_custom_call.1} parent=43 // pred_fallthru
          _
        // Predicated region
        $region65: #{tpu_custom_call.1} parent=43 // pred_check
          %p556 = pneg %p233
        $region66: #{tpu_custom_call.1} parent=43 // pred_check_branch
          %558 = sbr.rel (%p556) target = $region68
        $region67: #{tpu_custom_call.1} parent=43 // pred_region
          %560 = vsyncadd %s531, 0
          %s561 = smul.addr %s37, 2
          %s562 = sadd.s32 %s38, %s561
          %s563 = smul.addr %s562, 8
          %s564 = scalar_lea.hbm %s7, %s563
          %s566 = sshll.u32 %s534, 4
          %s567 = int_to_ptr.vmem [resolvable:$true] %s566
          %s568 = sshll.u32 %s564, 4
          %s569 = int_to_ptr.hbm [resolvable:$true] %s568
          %571 = dma.vmem_to_hbm [thread:$0]  %s567, 128, %s569, %s531
        $region68: #{tpu_custom_call.1} parent=43 // pred_fallthru
          _
        // Predicated region
        $region69: #{tpu_custom_call.1} parent=43 // pred_check
          %p572 = pneg %p261
        $region70: #{tpu_custom_call.1} parent=43 // pred_check_branch
          %574 = sbr.rel (%p572) target = $region72
        $region71: #{tpu_custom_call.1} parent=43 // pred_region
          %576 = vsyncadd %s536, 0
          %s577 = smul.addr %s37, 2
          %s578 = sadd.s32 %s38, %s577
          %s579 = smul.addr %s578, 8
          %s580 = scalar_lea.hbm %s8, %s579
          %s582 = sshll.u32 %s539, 4
          %s583 = int_to_ptr.vmem [resolvable:$true] %s582
          %s584 = sshll.u32 %s580, 4
          %s585 = int_to_ptr.hbm [resolvable:$true] %s584
          %587 = dma.vmem_to_hbm [thread:$0]  %s583, 128, %s585, %s536
        $region72: #{tpu_custom_call.1} parent=43 // pred_fallthru
          _
      $region44: #{tpu_custom_call.1} parent=5 // pred_fallthru
        _
      %p588 = scmp.le.s32.totalorder 2, %s28
      // Predicated region
      $region73: #{tpu_custom_call.1} parent=5 // pred_check
        %p589 = pneg %p588
      $region74: #{tpu_custom_call.1} parent=5 // pred_check_branch
        %591 = sbr.rel (%p589) target = $region76
      $region75: #{tpu_custom_call.1} parent=5 // pred_region
        %s592 = ssub.s32 %s28, 2
        // Predicated region
        $region77: #{tpu_custom_call.1} parent=75 // pred_check
          %p593 = pneg %p211
        $region78: #{tpu_custom_call.1} parent=75 // pred_check_branch
          %595 = sbr.rel (%p593) target = $region80
        $region79: #{tpu_custom_call.1} parent=75 // pred_region
          %s596 = sand.u32 %s196, 1
          %s597 = scalar_lea.sflag [#allocation4], %s596
          %s598 = sand.u32 %s196, 1
          %s599 = smul.addr %s598, 8
          %s600 = scalar_lea.vmem [#allocation10], %s599
          %602 = dma.done %s597, 128
        $region80: #{tpu_custom_call.1} parent=75 // pred_fallthru
          _
        // Predicated region
        $region81: #{tpu_custom_call.1} parent=75 // pred_check
          %p603 = pneg %p239
        $region82: #{tpu_custom_call.1} parent=75 // pred_check_branch
          %605 = sbr.rel (%p603) target = $region84
        $region83: #{tpu_custom_call.1} parent=75 // pred_region
          %s606 = sand.u32 %s34, 1
          %s607 = scalar_lea.sflag [#allocation12], %s606
          %s608 = sand.u32 %s224, 1
          %s609 = smul.addr %s608, 8
          %s610 = scalar_lea.vmem [#allocation11], %s609
          %612 = dma.done %s607, 128
        $region84: #{tpu_custom_call.1} parent=75 // pred_fallthru
          _
        // Predicated region
        $region85: #{tpu_custom_call.1} parent=75 // pred_check
          %p613 = pneg %p267
        $region86: #{tpu_custom_call.1} parent=75 // pred_check_branch
          %615 = sbr.rel (%p613) target = $region88
        $region87: #{tpu_custom_call.1} parent=75 // pred_region
          %s616 = sand.u32 %s34, 1
          %s617 = scalar_lea.sflag [#allocation12], %s616
          %s618 = sand.u32 %s252, 1
          %s619 = smul.addr %s618, 8
          %s620 = scalar_lea.vmem [#allocation13], %s619
          %622 = dma.done %s617, 128
        $region88: #{tpu_custom_call.1} parent=75 // pred_fallthru
          _
      $region76: #{tpu_custom_call.1} parent=5 // pred_fallthru
        _
    $region6: #{tpu_custom_call.1} parent=1 // loop_footer
      %s32 = sadd.s32 1, %s28
    $region7: #{tpu_custom_call.1} parent=1 // loop_footer_branch
      %27 = sbr.rel target = $region3
    $region8: #{tpu_custom_call.1} parent=1 // loop_exit
      _
    %623 = vsyncpa [#allocation3], 1
    %s624 = scalar_lea.sflag [#allocation3], 1
    %625 = vsyncpa %s624, 1
    %626 = vsyncpa [#allocation6], 1
    %s627 = scalar_lea.sflag [#allocation6], 1
    %628 = vsyncpa %s627, 1
    %629 = vsyncpa [#allocation9], 1
    %630 = vsyncpa [#allocation4], 1
    %s631 = scalar_lea.sflag [#allocation4], 1
    %632 = vsyncpa %s631, 1
    %633 = vsyncpa [#allocation12], 1
    %s634 = scalar_lea.sflag [#allocation12], 1
    %635 = vsyncpa %s634, 1

// kernel: tpu_custom_call.1
$region0: #{tpu_custom_call.1}
  #allocation0 [shape = 'u32[]', space=smem, size = 0x4, offset = 0x4, fixed_abs, tag = 'smem constant byte address 0x4 - core index']
  #allocation1 [shape = 'u32[72,128]{1,0:T(1,128)}', space=vmem, size = 0x9000, scoped, tag = 'internal scratch']
  %s0 = inlined_call_operand.hbm [shape: f32[2,16,32], index: 0, kind: input, shape index: {}]
  %s1 = inlined_call_operand.hbm [shape: f32[2,16,32], index: 1, kind: input, shape index: {}]
  %s2 = inlined_call_operand.hbm [shape: bf16[32,64], index: 2, kind: input, shape index: {}]
  %s3 = inlined_call_operand.vmem [shape: f32[1,64], index: 3, kind: input, shape index: {}]
  %s4 = inlined_call_operand.hbm [shape: bf16[32,32], index: 4, kind: input, shape index: {}]
  %s5 = inlined_call_operand.vmem [shape: f32[1,32], index: 5, kind: input, shape index: {}]
  %s6 = inlined_call_operand.hbm [shape: f32[2,16,32], index: 6, kind: output, shape index: {0}]
  %s7 = inlined_call_operand.hbm [shape: f32[2,16,32], index: 7, kind: output, shape index: {1}]
  %s8 = inlined_call_operand.hbm [shape: f32[2,16,32], index: 8, kind: output, shape index: {2}]
  %9 = xla_tuple %s6, %s7, %s8
  %s10 = sld [smem:[#allocation0]]
  $region89: #{tpu_custom_call.1} parent=0
    _
  %s12 = ssub.s32 1, %s10
  %s13 = scalar_select 0, %s12, %s10
  $region1: #{tpu_custom_call.1} parent=0
    #allocation2 [shape = 'u8[8192]{0}', space=vmem, size = 0x2000, scoped, tag = 'input window, operand 0']
    #allocation3 [shape = 's32[2]{0}', space=sflag, size = 0x8, scoped, tag = 'scoped memory for tpu_custom_call.1']
    #allocation4 [shape = 's32[2]{0}', space=sflag, size = 0x8, scoped, tag = 'scoped memory for tpu_custom_call.1']
    #allocation5 [shape = 'u8[8192]{0}', space=vmem, size = 0x2000, scoped, tag = 'input window, operand 1']
    #allocation6 [shape = 's32[2]{0}', space=sflag, size = 0x8, scoped, tag = 'scoped memory for tpu_custom_call.1']
    #allocation7 [shape = 'u8[8192]{0}', space=vmem, size = 0x2000, scoped, tag = 'input window, operand 2, single buffered']
    #allocation8 [shape = 'u8[8192]{0}', space=vmem, size = 0x2000, scoped, tag = 'input window, operand 4, single buffered']
    #allocation9 [shape = 's32[1]{0}', space=sflag, size = 0x4, scoped, tag = 'scoped memory for tpu_custom_call.1']
    #allocation10 [shape = 'u8[8192]{0}', space=vmem, size = 0x2000, scoped, tag = 'output window, operand 0']
    #allocation11 [shape = 'u8[8192]{0}', space=vmem, size = 0x2000, scoped, tag = 'output window, operand 1']
    #allocation12 [shape = 's32[2]{0}', space=sflag, size = 0x8, scoped, tag = 'scoped memory for tpu_custom_call.1']
    #allocation13 [shape = 'u8[8192]{0}', space=vmem, size = 0x2000, scoped, tag = 'output window, operand 2']
    %14 = vsyncpa [#allocation3], 0
    %s15 = scalar_lea.sflag [#allocation3], 1
    %16 = vsyncpa %s15, 0
    %17 = vsyncpa [#allocation6], 0
    %s18 = scalar_lea.sflag [#allocation6], 1
    %19 = vsyncpa %s18, 0
    %20 = vsyncpa [#allocation9], 0
    %21 = vsyncpa [#allocation4], 0
    %s22 = scalar_lea.sflag [#allocation4], 1
    %23 = vsyncpa %s22, 0
    %24 = vsyncpa [#allocation12], 0
    %s25 = scalar_lea.sflag [#allocation12], 1
    %26 = vsyncpa %s25, 0
    loop: start=0, step=1, limit=6
    $region2: #{tpu_custom_call.1} parent=1 // loop_pre_header
      _
    $region3: #{tpu_custom_call.1} parent=1 // loop_header
      %s28 = sphi 0, %s32
      %p29 = scmp.ge.s32.totalorder %s28, 6
      %s35 = sphi 0, %s47
      %s36 = sphi 0, %s43
      %s37 = sphi 0, %s35
      %s38 = sphi 0, %s36
      %s39 = sphi 0, %s37
      %s40 = sphi 0, %s38
      %s52 = sphi 0, %s54
      %s55 = sphi 0, %s52
      %s56 = sphi 0, %s55
      %s72 = sphi 0, %s56
      %s80 = sphi 0, %s82
      %s83 = sphi 0, %s80
      %s84 = sphi 0, %s83
      %s100 = sphi 0, %s84
      %s104 = sphi 0, %s104
      %s106 = sphi 0, %s104
      %s107 = sphi 0, %s106
      %s121 = sphi 0, %s107
      %s125 = sphi 0, %s125
      %s127 = sphi 0, %s125
      %s128 = sphi 0, %s127
      %s142 = sphi 0, %s128
      %s146 = sphi 0, %s146
      %s148 = sphi 0, %s146
      %s149 = sphi 0, %s148
      %s163 = sphi 0, %s149
      %s167 = sphi 0, %s167
      %s169 = sphi 0, %s167
      %s170 = sphi 0, %s169
      %s184 = sphi 0, %s170
      %s192 = sphi 0, %s194
      %s195 = sphi 0, %s192
      %s196 = sphi 0, %s195
      %s212 = sphi 0, %s196
      %s220 = sphi 0, %s222
      %s223 = sphi 0, %s220
      %s224 = sphi 0, %s223
      %s240 = sphi 0, %s224
      %s248 = sphi 0, %s250
      %s251 = sphi 0, %s248
      %s252 = sphi 0, %s251
      %s268 = sphi 0, %s252
    $region4: #{tpu_custom_call.1} parent=1 // loop_header_branch
      %31 = sbr.rel (%p29) target = $region8
    $region5: #{tpu_custom_call.1} parent=1 // loop_body
      %s33 = ssub.s32 %s28, 1
      %s34 = ssub.s32 %s28, 2
      %s41 = sadd.s32 1, %s36
      %p42 = scmp.ge.s32.totalorder %s41, 2
      %s43 = scalar_select %p42, 0, %s41
      %s44 = sadd.s32 1, %s35
      %s45 = scalar_select %p42, %s44, %s35
      %p46 = scmp.ge.s32.totalorder %s45, 2
      %s47 = scalar_select %p46, 0, %s45
      %s48 = ssub.s32 %s35, %s47
      %s49 = ssub.s32 %s36, %s43
      %s50 = sor.u32 %s48, %s49
      %p51 = scmp.eq.s32.totalorder %s50, 0
      %s53 = sadd.s32 %s52, 1
      %s54 = scalar_select %p51, %s52, %s53
      %p57 = pneg %p51
      %p58 = scmp.eq.s32.totalorder %s28, 3
      %p59 = por %p57, %p58
      %p60 = scmp.ne.s32.totalorder %s52, %s55
      %p61 = scmp.eq.s32.totalorder %s28, 0
      %p62 = por %p60, %p61
      %p63 = scmp.ne.s32.totalorder %s52, %s55
      %p64 = scmp.eq.s32.totalorder %s33, 3
      %p65 = por %p63, %p64
      %p66 = scmp.ne.s32.totalorder %s55, %s56
      %p67 = scmp.eq.s32.totalorder %s33, 0
      %p68 = por %p66, %p67
      %p69 = scmp.ne.s32.totalorder %s55, %s56
      %p70 = scmp.eq.s32.totalorder %s34, 3
      %p71 = por %p69, %p70
      %p73 = scmp.ne.s32.totalorder %s56, %s72
      %p74 = scmp.eq.s32.totalorder %s34, 0
      %p75 = por %p73, %p74
      %s76 = ssub.s32 %s35, %s47
      %s77 = ssub.s32 %s36, %s43
      %s78 = sor.u32 %s76, %s77
      %p79 = scmp.eq.s32.totalorder %s78, 0
      %s81 = sadd.s32 %s80, 1
      %s82 = scalar_select %p79, %s80, %s81
      %p85 = pneg %p79
      %p86 = scmp.eq.s32.totalorder %s28, 3
      %p87 = por %p85, %p86
      %p88 = scmp.ne.s32.totalorder %s80, %s83
      %p89 = scmp.eq.s32.totalorder %s28, 0
      %p90 = por %p88, %p89
      %p91 = scmp.ne.s32.totalorder %s80, %s83
      %p92 = scmp.eq.s32.totalorder %s33, 3
      %p93 = por %p91, %p92
      %p94 = scmp.ne.s32.totalorder %s83, %s84
      %p95 = scmp.eq.s32.totalorder %s33, 0
      %p96 = por %p94, %p95
      %p97 = scmp.ne.s32.totalorder %s83, %s84
      %p98 = scmp.eq.s32.totalorder %s34, 3
      %p99 = por %p97, %p98
      %p101 = scmp.ne.s32.totalorder %s84, %s100
      %p102 = scmp.eq.s32.totalorder %s34, 0
      %p103 = por %p101, %p102
      %s105 = sadd.s32 %s104, 1
      %p108 = scmp.eq.s32.totalorder %s28, 3
      %p109 = scmp.ne.s32.totalorder %s104, %s106
      %p110 = scmp.eq.s32.totalorder %s28, 0
      %p111 = por %p109, %p110
      %p112 = scmp.ne.s32.totalorder %s104, %s106
      %p113 = scmp.eq.s32.totalorder %s33, 3
      %p114 = por %p112, %p113
      %p115 = scmp.ne.s32.totalorder %s106, %s107
      %p116 = scmp.eq.s32.totalorder %s33, 0
      %p117 = por %p115, %p116
      %p118 = scmp.ne.s32.totalorder %s106, %s107
      %p119 = scmp.eq.s32.totalorder %s34, 3
      %p120 = por %p118, %p119
      %p122 = scmp.ne.s32.totalorder %s107, %s121
      %p123 = scmp.eq.s32.totalorder %s34, 0
      %p124 = por %p122, %p123
      %s126 = sadd.s32 %s125, 1
      %p129 = scmp.eq.s32.totalorder %s28, 3
      %p130 = scmp.ne.s32.totalorder %s125, %s127
      %p131 = scmp.eq.s32.totalorder %s28, 0
      %p132 = por %p130, %p131
      %p133 = scmp.ne.s32.totalorder %s125, %s127
      %p134 = scmp.eq.s32.totalorder %s33, 3
      %p135 = por %p133, %p134
      %p136 = scmp.ne.s32.totalorder %s127, %s128
      %p137 = scmp.eq.s32.totalorder %s33, 0
      %p138 = por %p136, %p137
      %p139 = scmp.ne.s32.totalorder %s127, %s128
      %p140 = scmp.eq.s32.totalorder %s34, 3
      %p141 = por %p139, %p140
      %p143 = scmp.ne.s32.totalorder %s128, %s142
      %p144 = scmp.eq.s32.totalorder %s34, 0
      %p145 = por %p143, %p144
      %s147 = sadd.s32 %s146, 1
      %p150 = scmp.eq.s32.totalorder %s28, 3
      %p151 = scmp.ne.s32.totalorder %s146, %s148
      %p152 = scmp.eq.s32.totalorder %s28, 0
      %p153 = por %p151, %p152
      %p154 = scmp.ne.s32.totalorder %s146, %s148
      %p155 = scmp.eq.s32.totalorder %s33, 3
      %p156 = por %p154, %p155
      %p157 = scmp.ne.s32.totalorder %s148, %s149
      %p158 = scmp.eq.s32.totalorder %s33, 0
      %p159 = por %p157, %p158
      %p160 = scmp.ne.s32.totalorder %s148, %s149
      %p161 = scmp.eq.s32.totalorder %s34, 3
      %p162 = por %p160, %p161
      %p164 = scmp.ne.s32.totalorder %s149, %s163
      %p165 = scmp.eq.s32.totalorder %s34, 0
      %p166 = por %p164, %p165
      %s168 = sadd.s32 %s167, 1
      %p171 = scmp.eq.s32.totalorder %s28, 3
      %p172 = scmp.ne.s32.totalorder %s167, %s169
      %p173 = scmp.eq.s32.totalorder %s28, 0
      %p174 = por %p172, %p173
      %p175 = scmp.ne.s32.totalorder %s167, %s169
      %p176 = scmp.eq.s32.totalorder %s33, 3
      %p177 = por %p175, %p176
      %p178 = scmp.ne.s32.totalorder %s169, %s170
      %p179 = scmp.eq.s32.totalorder %s33, 0
      %p180 = por %p178, %p179
      %p181 = scmp.ne.s32.totalorder %s169, %s170
      %p182 = scmp.eq.s32.totalorder %s34, 3
      %p183 = por %p181, %p182
      %p185 = scmp.ne.s32.totalorder %s170, %s184
      %p186 = scmp.eq.s32.totalorder %s34, 0
      %p187 = por %p185, %p186
      %s188 = ssub.s32 %s35, %s47
      %s189 = ssub.s32 %s36, %s43
      %s190 = sor.u32 %s188, %s189
      %p191 = scmp.eq.s32.totalorder %s190, 0
      %s193 = sadd.s32 %s192, 1
      %s194 = scalar_select %p191, %s192, %s193
      %p197 = pneg %p191
      %p198 = scmp.eq.s32.totalorder %s28, 3
      %p199 = por %p197, %p198
      %p200 = scmp.ne.s32.totalorder %s192, %s195
      %p201 = scmp.eq.s32.totalorder %s28, 0
      %p202 = por %p200, %p201
      %p203 = scmp.ne.s32.totalorder %s192, %s195
      %p204 = scmp.eq.s32.totalorder %s33, 3
      %p205 = por %p203, %p204
      %p206 = scmp.ne.s32.totalorder %s195, %s196
      %p207 = scmp.eq.s32.totalorder %s33, 0
      %p208 = por %p206, %p207
      %p209 = scmp.ne.s32.totalorder %s195, %s196
      %p210 = scmp.eq.s32.totalorder %s34, 3
      %p211 = por %p209, %p210
      %p213 = scmp.ne.s32.totalorder %s196, %s212
      %p214 = scmp.eq.s32.totalorder %s34, 0
      %p215 = por %p213, %p214
      %s216 = ssub.s32 %s35, %s47
      %s217 = ssub.s32 %s36, %s43
      %s218 = sor.u32 %s216, %s217
      %p219 = scmp.eq.s32.totalorder %s218, 0
      %s221 = sadd.s32 %s220, 1
      %s222 = scalar_select %p219, %s220, %s221
      %p225 = pneg %p219
      %p226 = scmp.eq.s32.totalorder %s28, 3
      %p227 = por %p225, %p226
      %p228 = scmp.ne.s32.totalorder %s220, %s223
      %p229 = scmp.eq.s32.totalorder %s28, 0
      %p230 = por %p228, %p229
      %p231 = scmp.ne.s32.totalorder %s220, %s223
      %p232 = scmp.eq.s32.totalorder %s33, 3
      %p233 = por %p231, %p232
      %p234 = scmp.ne.s32.totalorder %s223, %s224
      %p235 = scmp.eq.s32.totalorder %s33, 0
      %p236 = por %p234, %p235
      %p237 = scmp.ne.s32.totalorder %s223, %s224
      %p238 = scmp.eq.s32.totalorder %s34, 3
      %p239 = por %p237, %p238
      %p241 = scmp.ne.s32.totalorder %s224, %s240
      %p242 = scmp.eq.s32.totalorder %s34, 0
      %p243 = por %p241, %p242
      %s244 = ssub.s32 %s35, %s47
      %s245 = ssub.s32 %s36, %s43
      %s246 = sor.u32 %s244, %s245
      %p247 = scmp.eq.s32.totalorder %s246, 0
      %s249 = sadd.s32 %s248, 1
      %s250 = scalar_select %p247, %s248, %s249
      %p253 = pneg %p247
      %p254 = scmp.eq.s32.totalorder %s28, 3
      %p255 = por %p253, %p254
      %p256 = scmp.ne.s32.totalorder %s248, %s251
      %p257 = scmp.eq.s32.totalorder %s28, 0
      %p258 = por %p256, %p257
      %p259 = scmp.ne.s32.totalorder %s248, %s251
      %p260 = scmp.eq.s32.totalorder %s33, 3
      %p261 = por %p259, %p260
      %p262 = scmp.ne.s32.totalorder %s251, %s252
      %p263 = scmp.eq.s32.totalorder %s33, 0
      %p264 = por %p262, %p263
      %p265 = scmp.ne.s32.totalorder %s251, %s252
      %p266 = scmp.eq.s32.totalorder %s34, 3
      %p267 = por %p265, %p266
      %p269 = scmp.ne.s32.totalorder %s252, %s268
      %p270 = scmp.eq.s32.totalorder %s34, 0
      %p271 = por %p269, %p270
      %p272 = scmp.le.s32.totalorder 1, %s28
      %p273 = scmp.lt.s32.totalorder %s28, 5
      %p274 = pnand %p272, %p273
      %p275 = pneg %p274
      // Predicated region
      $region9: #{tpu_custom_call.1} parent=5 // pred_check
        _
      $region10: #{tpu_custom_call.1} parent=5 // pred_check_branch
        %277 = sbr.rel (%p274) target = $region12
      $region11: #{tpu_custom_call.1} parent=5 // pred_region
        %s278 = ssub.s32 %s28, 1
        // Predicated region
        $region13: #{tpu_custom_call.1} parent=11 // pred_check
          %p279 = pneg %p117
        $region14: #{tpu_custom_call.1} parent=11 // pred_check_branch
          %281 = sbr.rel (%p279) target = $region16
        $region15: #{tpu_custom_call.1} parent=11 // pred_region
          %283 = vsyncadd [#allocation6], 0
          %s284 = sshll.u32 %s2, 4
          %s285 = int_to_ptr.hbm [resolvable:$true] %s284
          %s286 = sshll.u32 [#allocation7], 4
          %s287 = int_to_ptr.vmem [resolvable:$true] %s286
          %292 = dma.hbm_to_vmem [thread:$0]  %s285, 256, %s287, [#allocation6], 64, 64, 4
        $region16: #{tpu_custom_call.1} parent=11 // pred_fallthru
          _
        // Predicated region
        $region17: #{tpu_custom_call.1} parent=11 // pred_check
          %p293 = pneg %p138
        $region18: #{tpu_custom_call.1} parent=11 // pred_check_branch
          %295 = sbr.rel (%p293) target = $region20
        $region19: #{tpu_custom_call.1} parent=11 // pred_region
          _
        $region20: #{tpu_custom_call.1} parent=11 // pred_fallthru
          _
        // Predicated region
        $region21: #{tpu_custom_call.1} parent=11 // pred_check
          %p296 = pneg %p159
        $region22: #{tpu_custom_call.1} parent=11 // pred_check_branch
          %298 = sbr.rel (%p296) target = $region24
        $region23: #{tpu_custom_call.1} parent=11 // pred_region
          %300 = vsyncadd [#allocation9], 0
          %s301 = sshll.u32 %s4, 4
          %s302 = int_to_ptr.hbm [resolvable:$true] %s301
          %s303 = sshll.u32 [#allocation8], 4
          %s304 = int_to_ptr.vmem [resolvable:$true] %s303
          %309 = dma.hbm_to_vmem [thread:$0]  %s302, 256, %s304, [#allocation9], 64, 64, 4
        $region24: #{tpu_custom_call.1} parent=11 // pred_fallthru
          _
        // Predicated region
        $region25: #{tpu_custom_call.1} parent=11 // pred_check
          %p310 = pneg %p180
        $region26: #{tpu_custom_call.1} parent=11 // pred_check_branch
          %312 = sbr.rel (%p310) target = $region28
        $region27: #{tpu_custom_call.1} parent=11 // pred_region
          _
        $region28: #{tpu_custom_call.1} parent=11 // pred_fallthru
          _
      $region12: #{tpu_custom_call.1} parent=5 // pred_fallthru
        _
      %p313 = scmp.lt.s32.totalorder %s28, 4
      // Predicated region
      $region29: #{tpu_custom_call.1} parent=5 // pred_check
        %p314 = pneg %p313
      $region30: #{tpu_custom_call.1} parent=5 // pred_check_branch
        %316 = sbr.rel (%p314) target = $region32
      $region31: #{tpu_custom_call.1} parent=5 // pred_region
        // Predicated region
        $region33: #{tpu_custom_call.1} parent=31 // pred_check
          %p317 = pneg %p62
        $region34: #{tpu_custom_call.1} parent=31 // pred_check_branch
          %319 = sbr.rel (%p317) target = $region36
        $region35: #{tpu_custom_call.1} parent=31 // pred_region
          %s320 = sand.u32 %s52, 1
          %s321 = scalar_lea.sflag [#allocation3], %s320
          %s322 = sand.u32 %s52, 1
          %s323 = smul.addr %s322, 8
          %s324 = scalar_lea.vmem [#allocation2], %s323
          %326 = vsyncadd %s321, 0
          %s327 = smul.addr %s35, 2
          %s328 = sadd.s32 %s36, %s327
          %s329 = smul.addr %s328, 8
          %s330 = scalar_lea.hbm %s0, %s329
          %s332 = sshll.u32 %s330, 4
          %s333 = int_to_ptr.hbm [resolvable:$true] %s332
          %s334 = sshll.u32 %s324, 4
          %s335 = int_to_ptr.vmem [resolvable:$true] %s334
          %337 = dma.hbm_to_vmem [thread:$0]  %s333, 128, %s335, %s321
        $region36: #{tpu_custom_call.1} parent=31 // pred_fallthru
          _
        // Predicated region
        $region37: #{tpu_custom_call.1} parent=31 // pred_check
          %p338 = pneg %p90
        $region38: #{tpu_custom_call.1} parent=31 // pred_check_branch
          %340 = sbr.rel (%p338) target = $region40
        $region39: #{tpu_custom_call.1} parent=31 // pred_region
          %s341 = sand.u32 %s28, 1
          %s342 = scalar_lea.sflag [#allocation6], %s341
          %s343 = sand.u32 %s80, 1
          %s344 = smul.addr %s343, 8
          %s345 = scalar_lea.vmem [#allocation5], %s344
          %347 = vsyncadd %s342, 0
          %s348 = smul.addr %s35, 2
          %s349 = sadd.s32 %s36, %s348
          %s350 = smul.addr %s349, 8
          %s351 = scalar_lea.hbm %s1, %s350
          %s353 = sshll.u32 %s351, 4
          %s354 = int_to_ptr.hbm [resolvable:$true] %s353
          %s355 = sshll.u32 %s345, 4
          %s356 = int_to_ptr.vmem [resolvable:$true] %s355
          %358 = dma.hbm_to_vmem [thread:$0]  %s354, 128, %s356, %s342
        $region40: #{tpu_custom_call.1} parent=31 // pred_fallthru
          _
      $region32: #{tpu_custom_call.1} parent=5 // pred_fallthru
        _
      %p359 = scmp.le.s32.totalorder 1, %s28
      %p360 = scmp.lt.s32.totalorder %s28, 5
      %p361 = pnand %p359, %p360
      %p362 = pneg %p361
      // Predicated region
      $region41: #{tpu_custom_call.1} parent=5 // pred_check
        _
      $region42: #{tpu_custom_call.1} parent=5 // pred_check_branch
        %364 = sbr.rel (%p361) target = $region44
      $region43: #{tpu_custom_call.1} parent=5 // pred_region
        %s365 = ssub.s32 %s28, 1
        %s366 = sand.u32 %s55, 1
        %s367 = scalar_lea.sflag [#allocation3], %s366
        %s368 = sand.u32 %s55, 1
        %s369 = smul.addr %s368, 8
        %s370 = scalar_lea.vmem [#allocation2], %s369
        // Predicated region
        $region45: #{tpu_custom_call.1} parent=43 // pred_check
          %p371 = pneg %p68
        $region46: #{tpu_custom_call.1} parent=43 // pred_check_branch
          %373 = sbr.rel (%p371) target = $region48
        $region47: #{tpu_custom_call.1} parent=43 // pred_region
          %375 = dma.done %s367, 128
        $region48: #{tpu_custom_call.1} parent=43 // pred_fallthru
          _
        %s376 = sand.u32 %s33, 1
        %s377 = scalar_lea.sflag [#allocation6], %s376
        %s378 = sand.u32 %s83, 1
        %s379 = smul.addr %s378, 8
        %s380 = scalar_lea.vmem [#allocation5], %s379
        // Predicated region
        $region49: #{tpu_custom_call.1} parent=43 // pred_check
          %p381 = pneg %p96
        $region50: #{tpu_custom_call.1} parent=43 // pred_check_branch
          %383 = sbr.rel (%p381) target = $region52
        $region51: #{tpu_custom_call.1} parent=43 // pred_region
          %385 = dma.done %s377, 128
        $region52: #{tpu_custom_call.1} parent=43 // pred_fallthru
          _
        // Predicated region
        $region53: #{tpu_custom_call.1} parent=43 // pred_check
          %p386 = pneg %p117
        $region54: #{tpu_custom_call.1} parent=43 // pred_check_branch
          %388 = sbr.rel (%p386) target = $region56
        $region55: #{tpu_custom_call.1} parent=43 // pred_region
          %390 = dma.done [#allocation6], 256
        $region56: #{tpu_custom_call.1} parent=43 // pred_fallthru
          _
        // Predicated region
        $region57: #{tpu_custom_call.1} parent=43 // pred_check
          %p391 = pneg %p159
        $region58: #{tpu_custom_call.1} parent=43 // pred_check_branch
          %393 = sbr.rel (%p391) target = $region60
        $region59: #{tpu_custom_call.1} parent=43 // pred_region
          %395 = dma.done [#allocation9], 256
        $region60: #{tpu_custom_call.1} parent=43 // pred_fallthru
          _
        %s396 = sand.u32 %s55, 1
        %s397 = scalar_lea.sflag [#allocation3], %s396
        %s398 = sand.u32 %s55, 1
        %s399 = smul.addr %s398, 8
        %s400 = scalar_lea.vmem [#allocation2], %s399
        %p401 = pneg %p68
        %p402 = pneg %p65
        %s403 = sand.u32 %s33, 1
        %s404 = scalar_lea.sflag [#allocation6], %s403
        %s405 = sand.u32 %s83, 1
        %s406 = smul.addr %s405, 8
        %s407 = scalar_lea.vmem [#allocation5], %s406
        %p408 = pneg %p96
        %p409 = pneg %p93
        %p410 = pneg %p117
        %p411 = pneg %p114
        %p412 = pneg %p138
        %p413 = pneg %p135
        %p414 = pneg %p159
        %p415 = pneg %p156
        %p416 = pneg %p180
        %p417 = pneg %p177
        %p418 = pneg %p208
        %p419 = pneg %p205
        %s420 = sand.u32 %s195, 1
        %s421 = scalar_lea.sflag [#allocation4], %s420
        %s422 = sand.u32 %s195, 1
        %s423 = smul.addr %s422, 8
        %s424 = scalar_lea.vmem [#allocation10], %s423
        %p425 = pneg %p236
        %p426 = pneg %p233
        %s427 = sand.u32 %s33, 1
        %s428 = scalar_lea.sflag [#allocation12], %s427
        %s429 = sand.u32 %s223, 1
        %s430 = smul.addr %s429, 8
        %s431 = scalar_lea.vmem [#allocation11], %s430
        %p432 = pneg %p264
        %p433 = pneg %p261
        %s434 = sand.u32 %s33, 1
        %s435 = scalar_lea.sflag [#allocation12], %s434
        %s436 = sand.u32 %s251, 1
        %s437 = smul.addr %s436, 8
        %s438 = scalar_lea.vmem [#allocation13], %s437
        %v440 = vld [vmem:[%s370] sm:$0xff]
        %v441 = vld [vmem:[%s380] sm:$0xff]
        %v442 = vadd.f32 %v440, %v441
        %v443 = vpack.c.bf16 %v442, %v442
        %v444 = vld [vmem:[#allocation7] sm:$0xf]
        %v445 = vld [vmem:[#allocation7 + $0x4] sm:$0xf]
        %v446 = vld [vmem:[#allocation7 + $0x8] sm:$0xf]
        %v447 = vld [vmem:[#allocation7 + $0xc] sm:$0xf]
        %v448 = vld [vmem:[%s3] sm:$0x1]
        %v450 = vperm.slane %v448, 0
        %v456 = vunpack.c.l.b16 %v444
        %v457 = vunpack.c.l.b16 %v445
        %v458 = vunpack.c.l.b16 %v446
        %v459 = vunpack.c.l.b16 %v447
        %v460 = vpack.c.b16 %v457, %v456
        %v461 = vpack.c.b16 %v459, %v458
        %vm464 = vcmask 261120
        %v466 = vsel %vm464, %v443, 0
        %468 = vmatpush.bf16.msra.mxu0 0
        %469 = vmatpush.bf16.msra.mxu0 0
        %470 = vmatpush.bf16.msra.mxu0 0
        %471 = vmatpush.bf16.msra.mxu0 0
        %472 = vmatpush.bf16.msra.mxu0 0
        %473 = vmatpush.bf16.msra.mxu0 0
        %474 = vmatpush.bf16.msra.mxu0 %v461
        %475 = vmatpush.bf16.msra.mxu0 %v460
        %476 = vmatmul.bf16.gmra.mxu0 %v466
        %v477 = vpop.f32.mrf.mxu0
        %v478 = vadd.f32 %v450, %v477
        %v479 = vpop.f32.mrf.mxu0
        %480 = vdwg.mxu0
        %v481 = vpack.c.bf16 %v440, %v440
        %v482 = vld [vmem:[#allocation8] sm:$0xf]
        %v483 = vld [vmem:[#allocation8 + $0x4] sm:$0xf]
        %v484 = vld [vmem:[#allocation8 + $0x8] sm:$0xf]
        %v485 = vld [vmem:[#allocation8 + $0xc] sm:$0xf]
        %v486 = vld [vmem:[%s5] sm:$0x1]
        %v488 = vperm.slane %v486, 0
        %v494 = vunpack.c.l.b16 %v482
        %v495 = vunpack.c.l.b16 %v483
        %v496 = vunpack.c.l.b16 %v484
        %v497 = vunpack.c.l.b16 %v485
        %v498 = vpack.c.b16 %v495, %v494
        %v499 = vpack.c.b16 %v497, %v496
        %v503 = vsel %vm464, %v481, 0
        %505 = vmatpush.bf16.msra.mxu0 0
        %506 = vmatpush.bf16.msra.mxu0 0
        %507 = vmatpush.bf16.msra.mxu0 0
        %508 = vmatpush.bf16.msra.mxu0 0
        %509 = vmatpush.bf16.msra.mxu0 0
        %510 = vmatpush.bf16.msra.mxu0 0
        %511 = vmatpush.bf16.msra.mxu0 %v499
        %512 = vmatpush.bf16.msra.mxu0 %v498
        %513 = vmatmul.bf16.gmra.mxu0 %v503
        %v514 = vpop.f32.mrf.mxu0
        %v515 = vadd.f32 %v488, %v514
        %v516 = vpop.f32.mrf.mxu0
        %517 = vdwg.mxu0
        %518 = vst.msk [vmem:[%s424] sm:$0xff] %vm464, %v478
        %520 = vrot.lane.b32.xlu0 %v478, 96
        %v521 = vpop.permute.xlu0 %520
        %523 = vst.msk [vmem:[%s431] sm:$0xff] %vm464, %v521
        %524 = vst.msk [vmem:[%s438] sm:$0xff] %vm464, %v515
        %s525 = sand.u32 %s195, 1
        %s526 = scalar_lea.sflag [#allocation4], %s525
        %s527 = sand.u32 %s195, 1
        %s528 = smul.addr %s527, 8
        %s529 = scalar_lea.vmem [#allocation10], %s528
        %s530 = sand.u32 %s33, 1
        %s531 = scalar_lea.sflag [#allocation12], %s530
        %s532 = sand.u32 %s223, 1
        %s533 = smul.addr %s532, 8
        %s534 = scalar_lea.vmem [#allocation11], %s533
        %s535 = sand.u32 %s33, 1
        %s536 = scalar_lea.sflag [#allocation12], %s535
        %s537 = sand.u32 %s251, 1
        %s538 = smul.addr %s537, 8
        %s539 = scalar_lea.vmem [#allocation13], %s538
        // Predicated region
        $region61: #{tpu_custom_call.1} parent=43 // pred_check
          %p540 = pneg %p205
        $region62: #{tpu_custom_call.1} parent=43 // pred_check_branch
          %542 = sbr.rel (%p540) target = $region64
        $region63: #{tpu_custom_call.1} parent=43 // pred_region
          %544 = vsyncadd %s526, 0
          %s545 = smul.addr %s37, 2
          %s546 = sadd.s32 %s38, %s545
          %s547 = smul.addr %s546, 8
          %s548 = scalar_lea.hbm %s6, %s547
          %s550 = sshll.u32 %s529, 4
          %s551 = int_to_ptr.vmem [resolvable:$true] %s550
          %s552 = sshll.u32 %s548, 4
          %s553 = int_to_ptr.hbm [resolvable:$true] %s552
          %555 = dma.vmem_to_hbm [thread:$0]  %s551, 128, %s553, %s526
        $region64: #{tpu_custom_call.1} parent=43 // pred_fallthru
          _
        // Predicated region
        $region65: #{tpu_custom_call.1} parent=43 // pred_check
          %p556 = pneg %p233
        $region66: #{tpu_custom_call.1} parent=43 // pred_check_branch
          %558 = sbr.rel (%p556) target = $region68
        $region67: #{tpu_custom_call.1} parent=43 // pred_region
          %560 = vsyncadd %s531, 0
          %s561 = smul.addr %s37, 2
          %s562 = sadd.s32 %s38, %s561
          %s563 = smul.addr %s562, 8
          %s564 = scalar_lea.hbm %s7, %s563
          %s566 = sshll.u32 %s534, 4
          %s567 = int_to_ptr.vmem [resolvable:$true] %s566
          %s568 = sshll.u32 %s564, 4
          %s569 = int_to_ptr.hbm [resolvable:$true] %s568
          %571 = dma.vmem_to_hbm [thread:$0]  %s567, 128, %s569, %s531
        $region68: #{tpu_custom_call.1} parent=43 // pred_fallthru
          _
        // Predicated region
        $region69: #{tpu_custom_call.1} parent=43 // pred_check
          %p572 = pneg %p261
        $region70: #{tpu_custom_call.1} parent=43 // pred_check_branch
          %574 = sbr.rel (%p572) target = $region72
        $region71: #{tpu_custom_call.1} parent=43 // pred_region
          %576 = vsyncadd %s536, 0
          %s577 = smul.addr %s37, 2
          %s578 = sadd.s32 %s38, %s577
          %s579 = smul.addr %s578, 8
          %s580 = scalar_lea.hbm %s8, %s579
          %s582 = sshll.u32 %s539, 4
          %s583 = int_to_ptr.vmem [resolvable:$true] %s582
          %s584 = sshll.u32 %s580, 4
          %s585 = int_to_ptr.hbm [resolvable:$true] %s584
          %587 = dma.vmem_to_hbm [thread:$0]  %s583, 128, %s585, %s536
        $region72: #{tpu_custom_call.1} parent=43 // pred_fallthru
          _
      $region44: #{tpu_custom_call.1} parent=5 // pred_fallthru
        _
      %p588 = scmp.le.s32.totalorder 2, %s28
      // Predicated region
      $region73: #{tpu_custom_call.1} parent=5 // pred_check
        %p589 = pneg %p588
      $region74: #{tpu_custom_call.1} parent=5 // pred_check_branch
        %591 = sbr.rel (%p589) target = $region76
      $region75: #{tpu_custom_call.1} parent=5 // pred_region
        %s592 = ssub.s32 %s28, 2
        // Predicated region
        $region77: #{tpu_custom_call.1} parent=75 // pred_check
          %p593 = pneg %p211
        $region78: #{tpu_custom_call.1} parent=75 // pred_check_branch
          %595 = sbr.rel (%p593) target = $region80
        $region79: #{tpu_custom_call.1} parent=75 // pred_region
          %s596 = sand.u32 %s196, 1
          %s597 = scalar_lea.sflag [#allocation4], %s596
          %s598 = sand.u32 %s196, 1
          %s599 = smul.addr %s598, 8
          %s600 = scalar_lea.vmem [#allocation10], %s599
          %602 = dma.done %s597, 128
        $region80: #{tpu_custom_call.1} parent=75 // pred_fallthru
          _
        // Predicated region
        $region81: #{tpu_custom_call.1} parent=75 // pred_check
          %p603 = pneg %p239
        $region82: #{tpu_custom_call.1} parent=75 // pred_check_branch
          %605 = sbr.rel (%p603) target = $region84
        $region83: #{tpu_custom_call.1} parent=75 // pred_region
          %s606 = sand.u32 %s34, 1
          %s607 = scalar_lea.sflag [#allocation12], %s606
          %s608 = sand.u32 %s224, 1
          %s609 = smul.addr %s608, 8
          %s610 = scalar_lea.vmem [#allocation11], %s609
          %612 = dma.done %s607, 128
        $region84: #{tpu_custom_call.1} parent=75 // pred_fallthru
          _
        // Predicated region
        $region85: #{tpu_custom_call.1} parent=75 // pred_check
          %p613 = pneg %p267
        $region86: #{tpu_custom_call.1} parent=75 // pred_check_branch
          %615 = sbr.rel (%p613) target = $region88
        $region87: #{tpu_custom_call.1} parent=75 // pred_region
          %s616 = sand.u32 %s34, 1
          %s617 = scalar_lea.sflag [#allocation12], %s616
          %s618 = sand.u32 %s252, 1
          %s619 = smul.addr %s618, 8
          %s620 = scalar_lea.vmem [#allocation13], %s619
          %622 = dma.done %s617, 128
        $region88: #{tpu_custom_call.1} parent=75 // pred_fallthru
          _
      $region76: #{tpu_custom_call.1} parent=5 // pred_fallthru
        _
    $region6: #{tpu_custom_call.1} parent=1 // loop_footer
      %s32 = sadd.s32 1, %s28
    $region7: #{tpu_custom_call.1} parent=1 // loop_footer_branch
      %27 = sbr.rel target = $region3
    $region8: #{tpu_custom_call.1} parent=1 // loop_exit
      _
    %623 = vsyncpa [#allocation3], 1
    %s624 = scalar_lea.sflag [#allocation3], 1
    %625 = vsyncpa %s624, 1
    %626 = vsyncpa [#allocation6], 1
    %s627 = scalar_lea.sflag [#allocation6], 1
    %628 = vsyncpa %s627, 1
    %629 = vsyncpa [#allocation9], 1
    %630 = vsyncpa [#allocation4], 1
    %s631 = scalar_lea.sflag [#allocation4], 1
    %632 = vsyncpa %s631, 1
    %633 = vsyncpa [#allocation12], 1
    %s634 = scalar_lea.sflag [#allocation12], 1
    %635 = vsyncpa %s634, 1

</llo_original>
